<compile_context>
chip_gen: v7x
topology: tpu7x:2x2x1
jax: 0.10.0
libtpu: 0.0.40
codegen_flags: <defaults>
</compile_context>

<pallas_src>
import functools

import jax
import jax.numpy as jnp
from jax.experimental import pallas as pl
from jax.experimental.pallas import tpu as pltpu

# On a real TPU use the Mosaic fast paths (XLU roll, EUP approx reciprocal); on other
# backends (e.g. CPU interpret mode) fall back to plain lax ops so the script runs anywhere.
_ON_TPU = jax.default_backend() == "tpu"


def _shift_lanes(z, d, width):
    """src[:, t] = z[:, t + d]; wrap-around only ever lands in zeroed halo/pad lanes."""
    s = (-d) % width
    if s == 0:
        return z
    if _ON_TPU:
        return pltpu.roll(z, shift=s, axis=1)     # XLU slot, off the VALU critical path
    return jnp.roll(z, s, axis=1)


def _sigmoid(a):
    e = jnp.exp(-a)                                # EUP
    if _ON_TPU:
        return pl.reciprocal(1.0 + e, approx=True)  # EUP reciprocal, frees VALU bundles
    return 1.0 / (1.0 + e)


def _revnet_kernel(x_ref, cond_ref, mask_ref,
                   wx1, wc1, dw1, w31, bia1,
                   wx2, wc2, dw2, w32, bia2,
                   out_ref, *, feat, ksize):
    x1 = x_ref[0, :feat]                          # (F, W)  f32
    x2 = x_ref[0, feat:]                          # (F, W)  f32
    cond_bf = cond_ref[0]                         # (Fc, W) bf16 (cast in the wrapper)
    mask = mask_ref[...]                          # (1, W)  f32: 1 on data lanes, 0 on halo/pad
    pad = (ksize - 1) // 2
    width = x1.shape[-1]

    def f_branch(xin, wx_ref, wc_ref, dw_ref, w3_ref, bia_ref):
        wx = wx_ref[...]                          # (4F, F)  bf16
        wc = wc_ref[...]                          # (4F, Fc) bf16
        dw = dw_ref[...]                          # (2F, K)  f32
        w3 = w3_ref[...]                          # (F, F)   bf16
        bia = bia_ref[...]                        # (7F, 1)  f32 = [b1 | bd | b3]
        b1 = bia[:4 * feat]
        bd = bia[4 * feat:6 * feat]
        b3 = bia[6 * feat:]

        # 1x1 conv over concat([x, cond]) as two MXU matmuls (no concat copy), f32 accum.
        y = (jnp.dot(wx, xin.astype(jnp.bfloat16), preferred_element_type=jnp.float32)
             + jnp.dot(wc, cond_bf, preferred_element_type=jnp.float32)
             + b1)                                                 # (4F, W)
        z = y[:2 * feat] * _sigmoid(y[2 * feat:])                  # GLU over channels -> (2F, W)
        z = z * mask   # zero halo/pad lanes once -> depthwise taps need no per-tap selects

        # depthwise 'same' conv: lane shifts + multiply-accumulate (halo zeros = 'same' padding)
        u = None
        for k in range(ksize):
            d = k - pad
            tap = dw[:, k:k + 1] * _shift_lanes(z, d, width)
            u = (tap + bd) if u is None else (u + tap)             # bias folded into first tap
        v = u[:feat] * _sigmoid(u[feat:])                          # GLU -> (F, W)

        return (jnp.dot(w3, v.astype(jnp.bfloat16), preferred_element_type=jnp.float32)
                + b3)                                              # (F, W)

    x2n = x2 + f_branch(x1, wx1, wc1, dw1, w31, bia1)
    x1n = x1 + f_branch(x2n, wx2, wc2, dw2, w32, bia2)

    # single lane-dense output slab in the module's channel order [x1 | x2]
    out_ref[0, :feat] = x1n.astype(out_ref.dtype)
    out_ref[0, feat:] = x2n.astype(out_ref.dtype)


def inspection_revnet(x, cond, params, *, ksize, min_lanes=1024):
    """x: (B, 2F, T), cond: (B, Fc, T) -> (B, 2F, T). params: PyTorch-shaped 12-tuple."""
    B, C, T = x.shape
    feat = C // 2
    fc = cond.shape[1]
    assert ksize % 2 == 1, "padding='same' path implemented for odd kernel sizes"
    assert feat % 8 == 0 and fc % 8 == 0, "channel counts must be sublane (8) aligned"

    pad = (ksize - 1) // 2
    seg = T + 2 * pad                    # per-batch segment stride: data + zero halo lanes

    # --- pick batches-per-step: lane-dense slabs, bounded by a per-step VMEM budget ------
    bytes_per_lane = (2 * 2 * C * 4      # x in + out slabs, double-buffered, f32
                      + 2 * fc * 2       # cond slab, bf16, double-buffered
                      + 11 * feat * 4)   # f32 intermediates (y, z, taps, u, v)
    vmem_budget = 24 << 20               # conservative working-set target (v7x has 64 MiB VMEM)
    max_lanes = max(128, (vmem_budget // bytes_per_lane) // 128 * 128)
    target = max(128, min(min_lanes, max_lanes))

    gb = min(B, max(1, target // seg))   # batches folded into one grid step
    g = -(-B // gb)
    if g == 1 and B > 1:                 # keep >=2 grid steps so both v7x TCs get work
        gb = -(-B // 2)
        g = -(-B // gb)
    bp = g * gb
    w = gb * seg
    wp = -(-w // 128) * 128              # lane width padded to a multiple of 128
    # TODO(synk): for very long T add an inner "arbitrary" time grid axis with a (K-1)/2 halo
    # (and skip fold/unfold entirely when T is already 128-aligned and gb == 1).

    def fold(a, dtype):                  # (B, c, T) -> (g, c, wp) with per-segment zero halos
        c = a.shape[1]
        a = a.astype(dtype)
        a = jnp.pad(a, ((0, bp - B), (0, 0), (0, 2 * pad)))
        a = a.reshape(g, gb, c, seg).transpose(0, 2, 1, 3).reshape(g, c, w)
        return jnp.pad(a, ((0, 0), (0, 0), (0, wp - w)))

    def unfold(a):                       # (g, C, wp) -> (B, C, T)
        a = a[:, :, :w].reshape(g, C, gb, seg).transpose(0, 2, 1, 3).reshape(bp, C, seg)
        return a[:B, :, :T]

    xg = fold(x, x.dtype)                # residual path stays f32
    cg = fold(cond, jnp.bfloat16)        # cond only feeds the MXU: ship bf16

    # 1.0 on data lanes, 0.0 on halo / tail-pad lanes (one multiply replaces per-tap selects)
    lane = jnp.arange(wp, dtype=jnp.int32)
    mask = ((lane < w) & (lane % seg < T)).astype(jnp.float32).reshape(1, wp)

    # repack params: split the first 1x1 conv, cast MXU weights to bf16, fuse biases
    (w11, b11, dw1, bd1, w31, b31, w12, b12, dw2, bd2, w32, b32) = params

    def pack(w1, b1, dw, bd, w3, b3):
        return (w1[:, :feat].astype(jnp.bfloat16),   # x side of the (virtual) concat
                w1[:, feat:].astype(jnp.bfloat16),   # cond side
                dw.astype(jnp.float32),              # depthwise taps stay f32 (VPU work)
                w3.astype(jnp.bfloat16),
                jnp.concatenate([b1, bd, b3], axis=0).astype(jnp.float32))   # (7F, 1)

    kparams = pack(w11, b11, dw1, bd1, w31, b31) + pack(w12, b12, dw2, bd2, w32, b32)

    def batched_spec(c):
        return pl.BlockSpec((1, c, wp), lambda i: (i, 0, 0))

    def full_spec(a):
        return pl.BlockSpec(a.shape, lambda i: (0,) * a.ndim)

    weight_bytes = sum(int(p.size) * p.dtype.itemsize for p in kparams)
    est = bytes_per_lane * wp + 2 * weight_bytes + 2 * wp * 4
    vmem_limit = int(min(96 << 20, max(32 << 20, 2 * est)))

    kernel = functools.partial(_revnet_kernel, feat=feat, ksize=ksize)
    out = pl.pallas_call(
        kernel,
        out_shape=jax.ShapeDtypeStruct((g, C, wp), x.dtype),
        grid=(g,),
        in_specs=[batched_spec(C), batched_spec(fc), full_spec(mask)]
                 + [full_spec(p) for p in kparams],
        out_specs=batched_spec(C),
        input_output_aliases={0: 0} if _ON_TPU else {},   # reuse the folded-x HBM buffer
        compiler_params=pltpu.CompilerParams(
            dimension_semantics=("parallel",),
            vmem_limit_bytes=vmem_limit),
    )(xg, cg, mask, *kparams)

    return unfold(out)


def make_params(key, feat, feat_cond, ksize):
    """Deterministic synthetic weights matching the PyTorch module's shapes (1x1 convs as matrices)."""
    ks = jax.random.split(key, 12)
    s = 0.05

    def branch(k6):
        w1 = jax.random.normal(k6[0], (feat * 4, feat + feat_cond), jnp.float32) * s
        b1 = jax.random.normal(k6[1], (feat * 4, 1), jnp.float32) * s
        dw = jax.random.normal(k6[2], (feat * 2, ksize), jnp.float32) * s   # depthwise (2F,1,K) squeezed
        bd = jax.random.normal(k6[3], (feat * 2, 1), jnp.float32) * s
        w3 = jax.random.normal(k6[4], (feat, feat), jnp.float32) * s
        b3 = jax.random.normal(k6[5], (feat, 1), jnp.float32) * s
        return (w1, b1, dw, bd, w3, b3)

    return branch(ks[:6]) + branch(ks[6:])


def _ref_f_block(h, w1, b1, dw, bd, w3, b3, ksize):
    y = jnp.dot(w1, h, preferred_element_type=jnp.float32) + b1
    c4 = y.shape[0]
    z = y[:c4 // 2] * jax.nn.sigmoid(y[c4 // 2:])
    c2, t = z.shape
    pad = (ksize - 1) // 2
    zp = jnp.pad(z, ((0, 0), (pad, pad)))
    u = jnp.broadcast_to(bd, (c2, t))
    for k in range(ksize):
        u = u + dw[:, k:k + 1] * zp[:, k:k + t]
    v = u[:c2 // 2] * jax.nn.sigmoid(u[c2 // 2:])
    return jnp.dot(w3, v, preferred_element_type=jnp.float32) + b3


def ref_forward(x, cond, params, ksize):
    """Pure-JAX reference with the module's math (for correctness check)."""
    B, C, _ = x.shape
    feat = C // 2
    (w11, b11, dw1, bd1, w31, b31, w12, b12, dw2, bd2, w32, b32) = params
    outs = []
    for b in range(B):
        x1, x2, cd = x[b, :feat], x[b, feat:], cond[b]
        x2n = x2 + _ref_f_block(jnp.concatenate([x1, cd], 0), w11, b11, dw1, bd1, w31, b31, ksize)
        x1n = x1 + _ref_f_block(jnp.concatenate([x2n, cd], 0), w12, b12, dw2, bd2, w32, b32, ksize)
        outs.append(jnp.concatenate([x1n, x2n], 0))
    return jnp.stack(outs)


if __name__ == "__main__":
    # Small shapes consistent with the module: features=64 (F=32), features_cond=16,
    # kernel_size=7, T=64; with the per-batch halo each grid step is a 128-lane slab.
    B, FEATURES, FEAT_COND, KSIZE, T = 2, 64, 16, 7, 64
    feat = FEATURES // 2

    key = jax.random.PRNGKey(0)
    kx, kc, kp = jax.random.split(key, 3)
    x = jax.random.normal(kx, (B, FEATURES, T), jnp.float32)
    cond = jax.random.normal(kc, (B, FEAT_COND, T), jnp.float32)
    params = make_params(kp, feat, FEAT_COND, KSIZE)

    out = jax.block_until_ready(inspection_revnet(x, cond, params, ksize=KSIZE))
    ref = jax.block_until_ready(ref_forward(x, cond, params, KSIZE))

    assert out.shape == (B, FEATURES, T)
    assert jnp.allclose(out, ref, rtol=5e-3, atol=5e-3), "mismatch vs reference"

    print("KERNEL_OK")
</pallas_src>

<mosaic_0001>
module attributes {stable_mosaic.version = 11 : i64} {
  func.func @_revnet_kernel(%arg0: i32, %arg1: memref<1x64x128xf32, #tpu.memory_space<vmem>>, %arg2: memref<1x16x128xbf16, #tpu.memory_space<vmem>>, %arg3: memref<1x128xf32, #tpu.memory_space<vmem>>, %arg4: memref<128x32xbf16, #tpu.memory_space<vmem>>, %arg5: memref<128x16xbf16, #tpu.memory_space<vmem>>, %arg6: memref<64x7xf32, #tpu.memory_space<vmem>>, %arg7: memref<32x32xbf16, #tpu.memory_space<vmem>>, %arg8: memref<224x1xf32, #tpu.memory_space<vmem>>, %arg9: memref<128x32xbf16, #tpu.memory_space<vmem>>, %arg10: memref<128x16xbf16, #tpu.memory_space<vmem>>, %arg11: memref<64x7xf32, #tpu.memory_space<vmem>>, %arg12: memref<32x32xbf16, #tpu.memory_space<vmem>>, %arg13: memref<224x1xf32, #tpu.memory_space<vmem>>, %arg14: memref<1x64x128xf32, #tpu.memory_space<vmem>>) attributes {dimension_semantics = [#tpu.dimension_semantics<parallel>], iteration_bounds = array<i64: 2>, scalar_prefetch = 0 : i64, scratch_operands = 0 : i64, tpu.core_type = #tpu.core_type<tc>, window_params = [{transform_indices = @transform_0, window_bounds = array<i64: 1, 64, 128>}, {transform_indices = @transform_1, window_bounds = array<i64: 1, 16, 128>}, {pipeline_mode = #tpu.pipeline_mode<synchronous>, transform_indices = @transform_2, window_bounds = array<i64: 1, 128>}, {pipeline_mode = #tpu.pipeline_mode<synchronous>, transform_indices = @transform_3, window_bounds = array<i64: 128, 32>}, {pipeline_mode = #tpu.pipeline_mode<synchronous>, transform_indices = @transform_4, window_bounds = array<i64: 128, 16>}, {pipeline_mode = #tpu.pipeline_mode<synchronous>, transform_indices = @transform_5, window_bounds = array<i64: 64, 7>}, {pipeline_mode = #tpu.pipeline_mode<synchronous>, transform_indices = @transform_6, window_bounds = array<i64: 32, 32>}, {pipeline_mode = #tpu.pipeline_mode<synchronous>, transform_indices = @transform_7, window_bounds = array<i64: 224, 1>}, {pipeline_mode = #tpu.pipeline_mode<synchronous>, transform_indices = @transform_8, window_bounds = array<i64: 128, 32>}, {pipeline_mode = #tpu.pipeline_mode<synchronous>, transform_indices = @transform_9, window_bounds = array<i64: 128, 16>}, {pipeline_mode = #tpu.pipeline_mode<synchronous>, transform_indices = @transform_10, window_bounds = array<i64: 64, 7>}, {pipeline_mode = #tpu.pipeline_mode<synchronous>, transform_indices = @transform_11, window_bounds = array<i64: 32, 32>}, {pipeline_mode = #tpu.pipeline_mode<synchronous>, transform_indices = @transform_12, window_bounds = array<i64: 224, 1>}, {transform_indices = @transform_13, window_bounds = array<i64: 1, 64, 128>}]} {
    %c0 = arith.constant 0 : index
    %c0_0 = arith.constant 0 : index
    %c0_1 = arith.constant 0 : index
    %0 = vector.load %arg1[%c0, %c0_0, %c0_1] : memref<1x64x128xf32, #tpu.memory_space<vmem>>, vector<1x32x128xf32>
    %1 = vector.shape_cast %0 : vector<1x32x128xf32> to vector<32x128xf32>
    %c0_2 = arith.constant 0 : index
    %c32 = arith.constant 32 : index
    %c0_3 = arith.constant 0 : index
    %2 = vector.load %arg1[%c0_2, %c32, %c0_3] : memref<1x64x128xf32, #tpu.memory_space<vmem>>, vector<1x32x128xf32>
    %3 = vector.shape_cast %2 : vector<1x32x128xf32> to vector<32x128xf32>
    %c0_4 = arith.constant 0 : index
    %c0_5 = arith.constant 0 : index
    %c0_6 = arith.constant 0 : index
    %4 = vector.load %arg2[%c0_4, %c0_5, %c0_6] : memref<1x16x128xbf16, #tpu.memory_space<vmem>>, vector<1x16x128xbf16>
    %5 = vector.shape_cast %4 : vector<1x16x128xbf16> to vector<16x128xbf16>
    %c0_7 = arith.constant 0 : index
    %c0_8 = arith.constant 0 : index
    %6 = vector.load %arg3[%c0_7, %c0_8] : memref<1x128xf32, #tpu.memory_space<vmem>>, vector<1x128xf32>
    %c0_9 = arith.constant 0 : index
    %c0_10 = arith.constant 0 : index
    %7 = vector.load %arg4[%c0_9, %c0_10] : memref<128x32xbf16, #tpu.memory_space<vmem>>, vector<128x32xbf16>
    %c0_11 = arith.constant 0 : index
    %c0_12 = arith.constant 0 : index
    %8 = vector.load %arg5[%c0_11, %c0_12] : memref<128x16xbf16, #tpu.memory_space<vmem>>, vector<128x16xbf16>
    %c0_13 = arith.constant 0 : index
    %c0_14 = arith.constant 0 : index
    %9 = vector.load %arg6[%c0_13, %c0_14] : memref<64x7xf32, #tpu.memory_space<vmem>>, vector<64x7xf32>
    %c0_15 = arith.constant 0 : index
    %c0_16 = arith.constant 0 : index
    %10 = vector.load %arg7[%c0_15, %c0_16] : memref<32x32xbf16, #tpu.memory_space<vmem>>, vector<32x32xbf16>
    %c0_17 = arith.constant 0 : index
    %c0_18 = arith.constant 0 : index
    %11 = vector.load %arg8[%c0_17, %c0_18] : memref<224x1xf32, #tpu.memory_space<vmem>>, vector<224x1xf32>
    %12 = vector.extract_strided_slice %11 {offsets = [0, 0], sizes = [128, 1], strides = [1, 1]} : vector<224x1xf32> to vector<128x1xf32>
    %13 = vector.extract_strided_slice %11 {offsets = [128, 0], sizes = [64, 1], strides = [1, 1]} : vector<224x1xf32> to vector<64x1xf32>
    %14 = vector.extract_strided_slice %11 {offsets = [192, 0], sizes = [32, 1], strides = [1, 1]} : vector<224x1xf32> to vector<32x1xf32>
    %15 = arith.truncf %1 : vector<32x128xf32> to vector<32x128xbf16>
    %cst = arith.constant dense<0.000000e+00> : vector<128x128xf32>
    %16 = tpu.matmul %7, %15, %cst {dimension_numbers = #tpu.dot_dimension_numbers<[1], [0], [0], [1], [0, 0, 1, 1], [], []>} : vector<128x32xbf16>, vector<32x128xbf16>, vector<128x128xf32> -> vector<128x128xf32>
    %cst_19 = arith.constant dense<0.000000e+00> : vector<128x128xf32>
    %17 = tpu.matmul %8, %5, %cst_19 {dimension_numbers = #tpu.dot_dimension_numbers<[1], [0], [0], [1], [0, 0, 1, 1], [], []>} : vector<128x16xbf16>, vector<16x128xbf16>, vector<128x128xf32> -> vector<128x128xf32>
    %18 = arith.addf %16, %17 : vector<128x128xf32>
    %19 = vector.broadcast %12 : vector<128x1xf32> to vector<128x128xf32>
    %20 = arith.addf %18, %19 : vector<128x128xf32>
    %21 = vector.extract_strided_slice %20 {offsets = [0, 0], sizes = [64, 128], strides = [1, 1]} : vector<128x128xf32> to vector<64x128xf32>
    %22 = vector.extract_strided_slice %20 {offsets = [64, 0], sizes = [64, 128], strides = [1, 1]} : vector<128x128xf32> to vector<64x128xf32>
    %cst_20 = arith.constant 0.000000e+00 : f32
    %23 = vector.broadcast %cst_20 : f32 to vector<64x128xf32>
    %24 = arith.subf %23, %22 : vector<64x128xf32>
    %25 = math.exp %24 : vector<64x128xf32>
    %cst_21 = arith.constant 1.000000e+00 : f32
    %26 = vector.broadcast %cst_21 : f32 to vector<64x128xf32>
    %27 = arith.addf %26, %25 : vector<64x128xf32>
    %cst_22 = arith.constant 1.000000e+00 : f32
    %28 = vector.broadcast %cst_22 : f32 to vector<64x128xf32>
    %29 = arith.divf %28, %27 : vector<64x128xf32>
    %30 = arith.mulf %21, %29 : vector<64x128xf32>
    %31 = vector.broadcast %6 : vector<1x128xf32> to vector<64x128xf32>
    %32 = arith.mulf %30, %31 : vector<64x128xf32>
    %33 = vector.extract_strided_slice %9 {offsets = [0, 0], sizes = [64, 1], strides = [1, 1]} : vector<64x7xf32> to vector<64x1xf32>
    %34 = vector.extract_strided_slice %32 {offsets = [0, 125], sizes = [64, 3], strides = [1, 1]} : vector<64x128xf32> to vector<64x3xf32>
    %35 = vector.extract_strided_slice %32 {offsets = [0, 0], sizes = [64, 125], strides = [1, 1]} : vector<64x128xf32> to vector<64x125xf32>
    %36 = tpu.concatenate %34, %35 in 1 : vector<64x3xf32>, vector<64x125xf32> -> vector<64x128xf32>
    %37 = vector.broadcast %33 : vector<64x1xf32> to vector<64x128xf32>
    %38 = arith.mulf %37, %36 : vector<64x128xf32>
    %39 = vector.broadcast %13 : vector<64x1xf32> to vector<64x128xf32>
    %40 = arith.addf %38, %39 : vector<64x128xf32>
    %41 = vector.extract_strided_slice %9 {offsets = [0, 1], sizes = [64, 1], strides = [1, 1]} : vector<64x7xf32> to vector<64x1xf32>
    %42 = vector.extract_strided_slice %32 {offsets = [0, 126], sizes = [64, 2], strides = [1, 1]} : vector<64x128xf32> to vector<64x2xf32>
    %43 = vector.extract_strided_slice %32 {offsets = [0, 0], sizes = [64, 126], strides = [1, 1]} : vector<64x128xf32> to vector<64x126xf32>
    %44 = tpu.concatenate %42, %43 in 1 : vector<64x2xf32>, vector<64x126xf32> -> vector<64x128xf32>
    %45 = vector.broadcast %41 : vector<64x1xf32> to vector<64x128xf32>
    %46 = arith.mulf %45, %44 : vector<64x128xf32>
    %47 = arith.addf %40, %46 : vector<64x128xf32>
    %48 = vector.extract_strided_slice %9 {offsets = [0, 2], sizes = [64, 1], strides = [1, 1]} : vector<64x7xf32> to vector<64x1xf32>
    %49 = vector.extract_strided_slice %32 {offsets = [0, 127], sizes = [64, 1], strides = [1, 1]} : vector<64x128xf32> to vector<64x1xf32>
    %50 = vector.extract_strided_slice %32 {offsets = [0, 0], sizes = [64, 127], strides = [1, 1]} : vector<64x128xf32> to vector<64x127xf32>
    %51 = tpu.concatenate %49, %50 in 1 : vector<64x1xf32>, vector<64x127xf32> -> vector<64x128xf32>
    %52 = vector.broadcast %48 : vector<64x1xf32> to vector<64x128xf32>
    %53 = arith.mulf %52, %51 : vector<64x128xf32>
    %54 = arith.addf %47, %53 : vector<64x128xf32>
    %55 = vector.extract_strided_slice %9 {offsets = [0, 3], sizes = [64, 1], strides = [1, 1]} : vector<64x7xf32> to vector<64x1xf32>
    %56 = vector.broadcast %55 : vector<64x1xf32> to vector<64x128xf32>
    %57 = arith.mulf %56, %32 : vector<64x128xf32>
    %58 = arith.addf %54, %57 : vector<64x128xf32>
    %59 = vector.extract_strided_slice %9 {offsets = [0, 4], sizes = [64, 1], strides = [1, 1]} : vector<64x7xf32> to vector<64x1xf32>
    %60 = vector.extract_strided_slice %32 {offsets = [0, 1], sizes = [64, 127], strides = [1, 1]} : vector<64x128xf32> to vector<64x127xf32>
    %61 = vector.extract_strided_slice %32 {offsets = [0, 0], sizes = [64, 1], strides = [1, 1]} : vector<64x128xf32> to vector<64x1xf32>
    %62 = tpu.concatenate %60, %61 in 1 : vector<64x127xf32>, vector<64x1xf32> -> vector<64x128xf32>
    %63 = vector.broadcast %59 : vector<64x1xf32> to vector<64x128xf32>
    %64 = arith.mulf %63, %62 : vector<64x128xf32>
    %65 = arith.addf %58, %64 : vector<64x128xf32>
    %66 = vector.extract_strided_slice %9 {offsets = [0, 5], sizes = [64, 1], strides = [1, 1]} : vector<64x7xf32> to vector<64x1xf32>
    %67 = vector.extract_strided_slice %32 {offsets = [0, 2], sizes = [64, 126], strides = [1, 1]} : vector<64x128xf32> to vector<64x126xf32>
    %68 = vector.extract_strided_slice %32 {offsets = [0, 0], sizes = [64, 2], strides = [1, 1]} : vector<64x128xf32> to vector<64x2xf32>
    %69 = tpu.concatenate %67, %68 in 1 : vector<64x126xf32>, vector<64x2xf32> -> vector<64x128xf32>
    %70 = vector.broadcast %66 : vector<64x1xf32> to vector<64x128xf32>
    %71 = arith.mulf %70, %69 : vector<64x128xf32>
    %72 = arith.addf %65, %71 : vector<64x128xf32>
    %73 = vector.extract_strided_slice %9 {offsets = [0, 6], sizes = [64, 1], strides = [1, 1]} : vector<64x7xf32> to vector<64x1xf32>
    %74 = vector.extract_strided_slice %32 {offsets = [0, 3], sizes = [64, 125], strides = [1, 1]} : vector<64x128xf32> to vector<64x125xf32>
    %75 = vector.extract_strided_slice %32 {offsets = [0, 0], sizes = [64, 3], strides = [1, 1]} : vector<64x128xf32> to vector<64x3xf32>
    %76 = tpu.concatenate %74, %75 in 1 : vector<64x125xf32>, vector<64x3xf32> -> vector<64x128xf32>
    %77 = vector.broadcast %73 : vector<64x1xf32> to vector<64x128xf32>
    %78 = arith.mulf %77, %76 : vector<64x128xf32>
    %79 = arith.addf %72, %78 : vector<64x128xf32>
    %80 = vector.extract_strided_slice %79 {offsets = [0, 0], sizes = [32, 128], strides = [1, 1]} : vector<64x128xf32> to vector<32x128xf32>
    %81 = vector.extract_strided_slice %79 {offsets = [32, 0], sizes = [32, 128], strides = [1, 1]} : vector<64x128xf32> to vector<32x128xf32>
    %cst_23 = arith.constant 0.000000e+00 : f32
    %82 = vector.broadcast %cst_23 : f32 to vector<32x128xf32>
    %83 = arith.subf %82, %81 : vector<32x128xf32>
    %84 = math.exp %83 : vector<32x128xf32>
    %cst_24 = arith.constant 1.000000e+00 : f32
    %85 = vector.broadcast %cst_24 : f32 to vector<32x128xf32>
    %86 = arith.addf %85, %84 : vector<32x128xf32>
    %cst_25 = arith.constant 1.000000e+00 : f32
    %87 = vector.broadcast %cst_25 : f32 to vector<32x128xf32>
    %88 = arith.divf %87, %86 : vector<32x128xf32>
    %89 = arith.mulf %80, %88 : vector<32x128xf32>
    %90 = arith.truncf %89 : vector<32x128xf32> to vector<32x128xbf16>
    %cst_26 = arith.constant dense<0.000000e+00> : vector<32x128xf32>
    %91 = tpu.matmul %10, %90, %cst_26 {dimension_numbers = #tpu.dot_dimension_numbers<[1], [0], [0], [1], [0, 0, 1, 1], [], []>} : vector<32x32xbf16>, vector<32x128xbf16>, vector<32x128xf32> -> vector<32x128xf32>
    %92 = vector.broadcast %14 : vector<32x1xf32> to vector<32x128xf32>
    %93 = arith.addf %91, %92 : vector<32x128xf32>
    %94 = arith.addf %3, %93 : vector<32x128xf32>
    %c0_27 = arith.constant 0 : index
    %c0_28 = arith.constant 0 : index
    %95 = vector.load %arg9[%c0_27, %c0_28] : memref<128x32xbf16, #tpu.memory_space<vmem>>, vector<128x32xbf16>
    %c0_29 = arith.constant 0 : index
    %c0_30 = arith.constant 0 : index
    %96 = vector.load %arg10[%c0_29, %c0_30] : memref<128x16xbf16, #tpu.memory_space<vmem>>, vector<128x16xbf16>
    %c0_31 = arith.constant 0 : index
    %c0_32 = arith.constant 0 : index
    %97 = vector.load %arg11[%c0_31, %c0_32] : memref<64x7xf32, #tpu.memory_space<vmem>>, vector<64x7xf32>
    %c0_33 = arith.constant 0 : index
    %c0_34 = arith.constant 0 : index
    %98 = vector.load %arg12[%c0_33, %c0_34] : memref<32x32xbf16, #tpu.memory_space<vmem>>, vector<32x32xbf16>
    %c0_35 = arith.constant 0 : index
    %c0_36 = arith.constant 0 : index
    %99 = vector.load %arg13[%c0_35, %c0_36] : memref<224x1xf32, #tpu.memory_space<vmem>>, vector<224x1xf32>
    %100 = vector.extract_strided_slice %99 {offsets = [0, 0], sizes = [128, 1], strides = [1, 1]} : vector<224x1xf32> to vector<128x1xf32>
    %101 = vector.extract_strided_slice %99 {offsets = [128, 0], sizes = [64, 1], strides = [1, 1]} : vector<224x1xf32> to vector<64x1xf32>
    %102 = vector.extract_strided_slice %99 {offsets = [192, 0], sizes = [32, 1], strides = [1, 1]} : vector<224x1xf32> to vector<32x1xf32>
    %103 = arith.truncf %94 : vector<32x128xf32> to vector<32x128xbf16>
    %cst_37 = arith.constant dense<0.000000e+00> : vector<128x128xf32>
    %104 = tpu.matmul %95, %103, %cst_37 {dimension_numbers = #tpu.dot_dimension_numbers<[1], [0], [0], [1], [0, 0, 1, 1], [], []>} : vector<128x32xbf16>, vector<32x128xbf16>, vector<128x128xf32> -> vector<128x128xf32>
    %cst_38 = arith.constant dense<0.000000e+00> : vector<128x128xf32>
    %105 = tpu.matmul %96, %5, %cst_38 {dimension_numbers = #tpu.dot_dimension_numbers<[1], [0], [0], [1], [0, 0, 1, 1], [], []>} : vector<128x16xbf16>, vector<16x128xbf16>, vector<128x128xf32> -> vector<128x128xf32>
    %106 = arith.addf %104, %105 : vector<128x128xf32>
    %107 = vector.broadcast %100 : vector<128x1xf32> to vector<128x128xf32>
    %108 = arith.addf %106, %107 : vector<128x128xf32>
    %109 = vector.extract_strided_slice %108 {offsets = [0, 0], sizes = [64, 128], strides = [1, 1]} : vector<128x128xf32> to vector<64x128xf32>
    %110 = vector.extract_strided_slice %108 {offsets = [64, 0], sizes = [64, 128], strides = [1, 1]} : vector<128x128xf32> to vector<64x128xf32>
    %cst_39 = arith.constant 0.000000e+00 : f32
    %111 = vector.broadcast %cst_39 : f32 to vector<64x128xf32>
    %112 = arith.subf %111, %110 : vector<64x128xf32>
    %113 = math.exp %112 : vector<64x128xf32>
    %cst_40 = arith.constant 1.000000e+00 : f32
    %114 = vector.broadcast %cst_40 : f32 to vector<64x128xf32>
    %115 = arith.addf %114, %113 : vector<64x128xf32>
    %cst_41 = arith.constant 1.000000e+00 : f32
    %116 = vector.broadcast %cst_41 : f32 to vector<64x128xf32>
    %117 = arith.divf %116, %115 : vector<64x128xf32>
    %118 = arith.mulf %109, %117 : vector<64x128xf32>
    %119 = vector.broadcast %6 : vector<1x128xf32> to vector<64x128xf32>
    %120 = arith.mulf %118, %119 : vector<64x128xf32>
    %121 = vector.extract_strided_slice %97 {offsets = [0, 0], sizes = [64, 1], strides = [1, 1]} : vector<64x7xf32> to vector<64x1xf32>
    %122 = vector.extract_strided_slice %120 {offsets = [0, 125], sizes = [64, 3], strides = [1, 1]} : vector<64x128xf32> to vector<64x3xf32>
    %123 = vector.extract_strided_slice %120 {offsets = [0, 0], sizes = [64, 125], strides = [1, 1]} : vector<64x128xf32> to vector<64x125xf32>
    %124 = tpu.concatenate %122, %123 in 1 : vector<64x3xf32>, vector<64x125xf32> -> vector<64x128xf32>
    %125 = vector.broadcast %121 : vector<64x1xf32> to vector<64x128xf32>
    %126 = arith.mulf %125, %124 : vector<64x128xf32>
    %127 = vector.broadcast %101 : vector<64x1xf32> to vector<64x128xf32>
    %128 = arith.addf %126, %127 : vector<64x128xf32>
    %129 = vector.extract_strided_slice %97 {offsets = [0, 1], sizes = [64, 1], strides = [1, 1]} : vector<64x7xf32> to vector<64x1xf32>
    %130 = vector.extract_strided_slice %120 {offsets = [0, 126], sizes = [64, 2], strides = [1, 1]} : vector<64x128xf32> to vector<64x2xf32>
    %131 = vector.extract_strided_slice %120 {offsets = [0, 0], sizes = [64, 126], strides = [1, 1]} : vector<64x128xf32> to vector<64x126xf32>
    %132 = tpu.concatenate %130, %131 in 1 : vector<64x2xf32>, vector<64x126xf32> -> vector<64x128xf32>
    %133 = vector.broadcast %129 : vector<64x1xf32> to vector<64x128xf32>
    %134 = arith.mulf %133, %132 : vector<64x128xf32>
    %135 = arith.addf %128, %134 : vector<64x128xf32>
    %136 = vector.extract_strided_slice %97 {offsets = [0, 2], sizes = [64, 1], strides = [1, 1]} : vector<64x7xf32> to vector<64x1xf32>
    %137 = vector.extract_strided_slice %120 {offsets = [0, 127], sizes = [64, 1], strides = [1, 1]} : vector<64x128xf32> to vector<64x1xf32>
    %138 = vector.extract_strided_slice %120 {offsets = [0, 0], sizes = [64, 127], strides = [1, 1]} : vector<64x128xf32> to vector<64x127xf32>
    %139 = tpu.concatenate %137, %138 in 1 : vector<64x1xf32>, vector<64x127xf32> -> vector<64x128xf32>
    %140 = vector.broadcast %136 : vector<64x1xf32> to vector<64x128xf32>
    %141 = arith.mulf %140, %139 : vector<64x128xf32>
    %142 = arith.addf %135, %141 : vector<64x128xf32>
    %143 = vector.extract_strided_slice %97 {offsets = [0, 3], sizes = [64, 1], strides = [1, 1]} : vector<64x7xf32> to vector<64x1xf32>
    %144 = vector.broadcast %143 : vector<64x1xf32> to vector<64x128xf32>
    %145 = arith.mulf %144, %120 : vector<64x128xf32>
    %146 = arith.addf %142, %145 : vector<64x128xf32>
    %147 = vector.extract_strided_slice %97 {offsets = [0, 4], sizes = [64, 1], strides = [1, 1]} : vector<64x7xf32> to vector<64x1xf32>
    %148 = vector.extract_strided_slice %120 {offsets = [0, 1], sizes = [64, 127], strides = [1, 1]} : vector<64x128xf32> to vector<64x127xf32>
    %149 = vector.extract_strided_slice %120 {offsets = [0, 0], sizes = [64, 1], strides = [1, 1]} : vector<64x128xf32> to vector<64x1xf32>
    %150 = tpu.concatenate %148, %149 in 1 : vector<64x127xf32>, vector<64x1xf32> -> vector<64x128xf32>
    %151 = vector.broadcast %147 : vector<64x1xf32> to vector<64x128xf32>
    %152 = arith.mulf %151, %150 : vector<64x128xf32>
    %153 = arith.addf %146, %152 : vector<64x128xf32>
    %154 = vector.extract_strided_slice %97 {offsets = [0, 5], sizes = [64, 1], strides = [1, 1]} : vector<64x7xf32> to vector<64x1xf32>
    %155 = vector.extract_strided_slice %120 {offsets = [0, 2], sizes = [64, 126], strides = [1, 1]} : vector<64x128xf32> to vector<64x126xf32>
    %156 = vector.extract_strided_slice %120 {offsets = [0, 0], sizes = [64, 2], strides = [1, 1]} : vector<64x128xf32> to vector<64x2xf32>
    %157 = tpu.concatenate %155, %156 in 1 : vector<64x126xf32>, vector<64x2xf32> -> vector<64x128xf32>
    %158 = vector.broadcast %154 : vector<64x1xf32> to vector<64x128xf32>
    %159 = arith.mulf %158, %157 : vector<64x128xf32>
    %160 = arith.addf %153, %159 : vector<64x128xf32>
    %161 = vector.extract_strided_slice %97 {offsets = [0, 6], sizes = [64, 1], strides = [1, 1]} : vector<64x7xf32> to vector<64x1xf32>
    %162 = vector.extract_strided_slice %120 {offsets = [0, 3], sizes = [64, 125], strides = [1, 1]} : vector<64x128xf32> to vector<64x125xf32>
    %163 = vector.extract_strided_slice %120 {offsets = [0, 0], sizes = [64, 3], strides = [1, 1]} : vector<64x128xf32> to vector<64x3xf32>
    %164 = tpu.concatenate %162, %163 in 1 : vector<64x125xf32>, vector<64x3xf32> -> vector<64x128xf32>
    %165 = vector.broadcast %161 : vector<64x1xf32> to vector<64x128xf32>
    %166 = arith.mulf %165, %164 : vector<64x128xf32>
    %167 = arith.addf %160, %166 : vector<64x128xf32>
    %168 = vector.extract_strided_slice %167 {offsets = [0, 0], sizes = [32, 128], strides = [1, 1]} : vector<64x128xf32> to vector<32x128xf32>
    %169 = vector.extract_strided_slice %167 {offsets = [32, 0], sizes = [32, 128], strides = [1, 1]} : vector<64x128xf32> to vector<32x128xf32>
    %cst_42 = arith.constant 0.000000e+00 : f32
    %170 = vector.broadcast %cst_42 : f32 to vector<32x128xf32>
    %171 = arith.subf %170, %169 : vector<32x128xf32>
    %172 = math.exp %171 : vector<32x128xf32>
    %cst_43 = arith.constant 1.000000e+00 : f32
    %173 = vector.broadcast %cst_43 : f32 to vector<32x128xf32>
    %174 = arith.addf %173, %172 : vector<32x128xf32>
    %cst_44 = arith.constant 1.000000e+00 : f32
    %175 = vector.broadcast %cst_44 : f32 to vector<32x128xf32>
    %176 = arith.divf %175, %174 : vector<32x128xf32>
    %177 = arith.mulf %168, %176 : vector<32x128xf32>
    %178 = arith.truncf %177 : vector<32x128xf32> to vector<32x128xbf16>
    %cst_45 = arith.constant dense<0.000000e+00> : vector<32x128xf32>
    %179 = tpu.matmul %98, %178, %cst_45 {dimension_numbers = #tpu.dot_dimension_numbers<[1], [0], [0], [1], [0, 0, 1, 1], [], []>} : vector<32x32xbf16>, vector<32x128xbf16>, vector<32x128xf32> -> vector<32x128xf32>
    %180 = vector.broadcast %102 : vector<32x1xf32> to vector<32x128xf32>
    %181 = arith.addf %179, %180 : vector<32x128xf32>
    %182 = arith.addf %1, %181 : vector<32x128xf32>
    %c0_46 = arith.constant 0 : index
    %c0_47 = arith.constant 0 : index
    %c0_48 = arith.constant 0 : index
    %183 = vector.load %arg14[%c0_46, %c0_47, %c0_48] : memref<1x64x128xf32, #tpu.memory_space<vmem>>, vector<1x32x128xf32>
    %184 = vector.shape_cast %183 : vector<1x32x128xf32> to vector<32x128xf32>
    %185 = vector.shape_cast %182 : vector<32x128xf32> to vector<1x32x128xf32>
    tpu.vector_store %arg14[%c0_46, %c0_47, %c0_48], %185 {strides = array<i32>} : memref<1x64x128xf32, #tpu.memory_space<vmem>>, vector<1x32x128xf32>,
    %c0_49 = arith.constant 0 : index
    %c32_50 = arith.constant 32 : index
    %c0_51 = arith.constant 0 : index
    %186 = vector.load %arg14[%c0_49, %c32_50, %c0_51] : memref<1x64x128xf32, #tpu.memory_space<vmem>>, vector<1x32x128xf32>
    %187 = vector.shape_cast %186 : vector<1x32x128xf32> to vector<32x128xf32>
    %188 = vector.shape_cast %94 : vector<32x128xf32> to vector<1x32x128xf32>
    tpu.vector_store %arg14[%c0_49, %c32_50, %c0_51], %188 {strides = array<i32>} : memref<1x64x128xf32, #tpu.memory_space<vmem>>, vector<1x32x128xf32>,
    return
  }
  func.func @transform_0(%arg0: i32) -> (i32, i32, i32) {
    %c0_i32 = arith.constant 0 : i32
    %c0_i32_0 = arith.constant 0 : i32
    %c0_i32_1 = arith.constant 0 : i32
    return %arg0, %c0_i32, %c0_i32_0 : i32, i32, i32
  }
  func.func @transform_1(%arg0: i32) -> (i32, i32, i32) {
    %c0_i32 = arith.constant 0 : i32
    %c0_i32_0 = arith.constant 0 : i32
    %c0_i32_1 = arith.constant 0 : i32
    return %arg0, %c0_i32, %c0_i32_0 : i32, i32, i32
  }
  func.func @transform_2(%arg0: i32) -> (i32, i32) {
    %c0_i32 = arith.constant 0 : i32
    %c0_i32_0 = arith.constant 0 : i32
    %c0_i32_1 = arith.constant 0 : i32
    return %c0_i32, %c0_i32_0 : i32, i32
  }
  func.func @transform_3(%arg0: i32) -> (i32, i32) {
    %c0_i32 = arith.constant 0 : i32
    %c0_i32_0 = arith.constant 0 : i32
    %c0_i32_1 = arith.constant 0 : i32
    return %c0_i32, %c0_i32_0 : i32, i32
  }
  func.func @transform_4(%arg0: i32) -> (i32, i32) {
    %c0_i32 = arith.constant 0 : i32
    %c0_i32_0 = arith.constant 0 : i32
    %c0_i32_1 = arith.constant 0 : i32
    return %c0_i32, %c0_i32_0 : i32, i32
  }
  func.func @transform_5(%arg0: i32) -> (i32, i32) {
    %c0_i32 = arith.constant 0 : i32
    %c0_i32_0 = arith.constant 0 : i32
    %c0_i32_1 = arith.constant 0 : i32
    return %c0_i32, %c0_i32_0 : i32, i32
  }
  func.func @transform_6(%arg0: i32) -> (i32, i32) {
    %c0_i32 = arith.constant 0 : i32
    %c0_i32_0 = arith.constant 0 : i32
    %c0_i32_1 = arith.constant 0 : i32
    return %c0_i32, %c0_i32_0 : i32, i32
  }
  func.func @transform_7(%arg0: i32) -> (i32, i32) {
    %c0_i32 = arith.constant 0 : i32
    %c0_i32_0 = arith.constant 0 : i32
    %c0_i32_1 = arith.constant 0 : i32
    return %c0_i32, %c0_i32_0 : i32, i32
  }
  func.func @transform_8(%arg0: i32) -> (i32, i32) {
    %c0_i32 = arith.constant 0 : i32
    %c0_i32_0 = arith.constant 0 : i32
    %c0_i32_1 = arith.constant 0 : i32
    return %c0_i32, %c0_i32_0 : i32, i32
  }
  func.func @transform_9(%arg0: i32) -> (i32, i32) {
    %c0_i32 = arith.constant 0 : i32
    %c0_i32_0 = arith.constant 0 : i32
    %c0_i32_1 = arith.constant 0 : i32
    return %c0_i32, %c0_i32_0 : i32, i32
  }
  func.func @transform_10(%arg0: i32) -> (i32, i32) {
    %c0_i32 = arith.constant 0 : i32
    %c0_i32_0 = arith.constant 0 : i32
    %c0_i32_1 = arith.constant 0 : i32
    return %c0_i32, %c0_i32_0 : i32, i32
  }
  func.func @transform_11(%arg0: i32) -> (i32, i32) {
    %c0_i32 = arith.constant 0 : i32
    %c0_i32_0 = arith.constant 0 : i32
    %c0_i32_1 = arith.constant 0 : i32
    return %c0_i32, %c0_i32_0 : i32, i32
  }
  func.func @transform_12(%arg0: i32) -> (i32, i32) {
    %c0_i32 = arith.constant 0 : i32
    %c0_i32_0 = arith.constant 0 : i32
    %c0_i32_1 = arith.constant 0 : i32
    return %c0_i32, %c0_i32_0 : i32, i32
  }
  func.func @transform_13(%arg0: i32) -> (i32, i32, i32) {
    %c0_i32 = arith.constant 0 : i32
    %c0_i32_0 = arith.constant 0 : i32
    %c0_i32_1 = arith.constant 0 : i32
    return %arg0, %c0_i32, %c0_i32_0 : i32, i32, i32
  }
}

</mosaic_0001>

<llo_original>
// kernel: tpu_custom_call.1
$region0: #{tpu_custom_call.1}
  #allocation0 [shape = 'u32[]', space=smem, size = 0x4, offset = 0x4, fixed_abs, tag = 'smem constant byte address 0x4 - core index']
  #allocation1 [shape = 'u32[144,128]{1,0:T(1,128)}', space=vmem, size = 0x12000, scoped, tag = 'internal scratch']
  %s0 = inlined_call_operand.vmem [shape: f32[2,64,128], index: 0, kind: input, shape index: {}]
  %s1 = inlined_call_operand.vmem [shape: bf16[2,16,128], index: 1, kind: input, shape index: {}]
  %s2 = inlined_call_operand.vmem [shape: f32[1,128], index: 2, kind: input, shape index: {}]
  %s3 = inlined_call_operand.vmem [shape: bf16[128,32], index: 3, kind: input, shape index: {}]
  %s4 = inlined_call_operand.vmem [shape: bf16[128,16], index: 4, kind: input, shape index: {}]
  %s5 = inlined_call_operand.vmem [shape: f32[64,7], index: 5, kind: input, shape index: {}]
  %s6 = inlined_call_operand.vmem [shape: bf16[32,32], index: 6, kind: input, shape index: {}]
  %s7 = inlined_call_operand.vmem [shape: f32[224,1], index: 7, kind: input, shape index: {}]
  %s8 = inlined_call_operand.vmem [shape: bf16[128,32], index: 8, kind: input, shape index: {}]
  %s9 = inlined_call_operand.vmem [shape: bf16[128,16], index: 9, kind: input, shape index: {}]
  %s10 = inlined_call_operand.vmem [shape: f32[64,7], index: 10, kind: input, shape index: {}]
  %s11 = inlined_call_operand.vmem [shape: bf16[32,32], index: 11, kind: input, shape index: {}]
  %s12 = inlined_call_operand.vmem [shape: f32[224,1], index: 12, kind: input, shape index: {}]
  %s13 = inlined_call_operand.hbm [shape: f32[2,64,128], index: 13, kind: output, shape index: {}]
  %s14 = sld [smem:[#allocation0]]
  $region85: #{tpu_custom_call.1} parent=0
    _
  %s16 = ssub.s32 1, %s14
  %s17 = scalar_select 0, %s16, %s14
  $region1: #{tpu_custom_call.1} parent=0
    #allocation2 [shape = 'u8[65536]{0}', space=vmem, size = 0x10000, scoped, tag = 'output window, operand 0']
    #allocation3 [shape = 's32[2]{0}', space=sflag, size = 0x8, scoped, tag = 'scoped memory for tpu_custom_call.1']
    %18 = vsyncpa [#allocation3], 0
    %s19 = scalar_lea.sflag [#allocation3], 1
    %20 = vsyncpa %s19, 0
    loop: start=0, step=1, limit=4
    $region2: #{tpu_custom_call.1} parent=1 // loop_pre_header
      _
    $region3: #{tpu_custom_call.1} parent=1 // loop_header
      %s22 = sphi 0, %s26
      %p23 = scmp.ge.s32.totalorder %s22, 4
      %s32 = sphi 0, %s34
      %s35 = sphi 0, %s32
      %s36 = sphi 0, %s35
      %s52 = sphi 0, %s36
      %s58 = sphi 0, %s60
      %s61 = sphi 0, %s58
      %s62 = sphi 0, %s61
      %s78 = sphi 0, %s62
      %s82 = sphi 0, %s82
      %s84 = sphi 0, %s82
      %s85 = sphi 0, %s84
      %s99 = sphi 0, %s85
      %s103 = sphi 0, %s103
      %s105 = sphi 0, %s103
      %s106 = sphi 0, %s105
      %s120 = sphi 0, %s106
      %s124 = sphi 0, %s124
      %s126 = sphi 0, %s124
      %s127 = sphi 0, %s126
      %s141 = sphi 0, %s127
      %s145 = sphi 0, %s145
      %s147 = sphi 0, %s145
      %s148 = sphi 0, %s147
      %s162 = sphi 0, %s148
      %s166 = sphi 0, %s166
      %s168 = sphi 0, %s166
      %s169 = sphi 0, %s168
      %s183 = sphi 0, %s169
      %s187 = sphi 0, %s187
      %s189 = sphi 0, %s187
      %s190 = sphi 0, %s189
      %s204 = sphi 0, %s190
      %s208 = sphi 0, %s208
      %s210 = sphi 0, %s208
      %s211 = sphi 0, %s210
      %s225 = sphi 0, %s211
      %s229 = sphi 0, %s229
      %s231 = sphi 0, %s229
      %s232 = sphi 0, %s231
      %s246 = sphi 0, %s232
      %s250 = sphi 0, %s250
      %s252 = sphi 0, %s250
      %s253 = sphi 0, %s252
      %s267 = sphi 0, %s253
      %s271 = sphi 0, %s271
      %s273 = sphi 0, %s271
      %s274 = sphi 0, %s273
      %s288 = sphi 0, %s274
      %s292 = sphi 0, %s292
      %s294 = sphi 0, %s292
      %s295 = sphi 0, %s294
      %s309 = sphi 0, %s295
      %s315 = sphi 0, %s317
      %s318 = sphi 0, %s315
      %s319 = sphi 0, %s318
      %s335 = sphi 0, %s319
    $region4: #{tpu_custom_call.1} parent=1 // loop_header_branch
      %25 = sbr.rel (%p23) target = $region8
    $region5: #{tpu_custom_call.1} parent=1 // loop_body
      %s27 = ssub.s32 %s22, 1
      %s28 = ssub.s32 %s22, 2
      %s29 = sadd.s32 %s22, 1
      %s30 = ssub.s32 %s22, %s29
      %p31 = scmp.eq.s32.totalorder %s30, 0
      %s33 = sadd.s32 %s32, 1
      %s34 = scalar_select %p31, %s32, %s33
      %p37 = pneg %p31
      %p38 = scmp.eq.s32.totalorder %s22, 1
      %p39 = por %p37, %p38
      %p40 = scmp.ne.s32.totalorder %s32, %s35
      %p41 = scmp.eq.s32.totalorder %s22, 0
      %p42 = por %p40, %p41
      %p43 = scmp.ne.s32.totalorder %s32, %s35
      %p44 = scmp.eq.s32.totalorder %s27, 1
      %p45 = por %p43, %p44
      %p46 = scmp.ne.s32.totalorder %s35, %s36
      %p47 = scmp.eq.s32.totalorder %s27, 0
      %p48 = por %p46, %p47
      %p49 = scmp.ne.s32.totalorder %s35, %s36
      %p50 = scmp.eq.s32.totalorder %s28, 1
      %p51 = por %p49, %p50
      %p53 = scmp.ne.s32.totalorder %s36, %s52
      %p54 = scmp.eq.s32.totalorder %s28, 0
      %p55 = por %p53, %p54
      %s56 = ssub.s32 %s22, %s29
      %p57 = scmp.eq.s32.totalorder %s56, 0
      %s59 = sadd.s32 %s58, 1
      %s60 = scalar_select %p57, %s58, %s59
      %p63 = pneg %p57
      %p64 = scmp.eq.s32.totalorder %s22, 1
      %p65 = por %p63, %p64
      %p66 = scmp.ne.s32.totalorder %s58, %s61
      %p67 = scmp.eq.s32.totalorder %s22, 0
      %p68 = por %p66, %p67
      %p69 = scmp.ne.s32.totalorder %s58, %s61
      %p70 = scmp.eq.s32.totalorder %s27, 1
      %p71 = por %p69, %p70
      %p72 = scmp.ne.s32.totalorder %s61, %s62
      %p73 = scmp.eq.s32.totalorder %s27, 0
      %p74 = por %p72, %p73
      %p75 = scmp.ne.s32.totalorder %s61, %s62
      %p76 = scmp.eq.s32.totalorder %s28, 1
      %p77 = por %p75, %p76
      %p79 = scmp.ne.s32.totalorder %s62, %s78
      %p80 = scmp.eq.s32.totalorder %s28, 0
      %p81 = por %p79, %p80
      %s83 = sadd.s32 %s82, 1
      %p86 = scmp.eq.s32.totalorder %s22, 1
      %p87 = scmp.ne.s32.totalorder %s82, %s84
      %p88 = scmp.eq.s32.totalorder %s22, 0
      %p89 = por %p87, %p88
      %p90 = scmp.ne.s32.totalorder %s82, %s84
      %p91 = scmp.eq.s32.totalorder %s27, 1
      %p92 = por %p90, %p91
      %p93 = scmp.ne.s32.totalorder %s84, %s85
      %p94 = scmp.eq.s32.totalorder %s27, 0
      %p95 = por %p93, %p94
      %p96 = scmp.ne.s32.totalorder %s84, %s85
      %p97 = scmp.eq.s32.totalorder %s28, 1
      %p98 = por %p96, %p97
      %p100 = scmp.ne.s32.totalorder %s85, %s99
      %p101 = scmp.eq.s32.totalorder %s28, 0
      %p102 = por %p100, %p101
      %s104 = sadd.s32 %s103, 1
      %p107 = scmp.eq.s32.totalorder %s22, 1
      %p108 = scmp.ne.s32.totalorder %s103, %s105
      %p109 = scmp.eq.s32.totalorder %s22, 0
      %p110 = por %p108, %p109
      %p111 = scmp.ne.s32.totalorder %s103, %s105
      %p112 = scmp.eq.s32.totalorder %s27, 1
      %p113 = por %p111, %p112
      %p114 = scmp.ne.s32.totalorder %s105, %s106
      %p115 = scmp.eq.s32.totalorder %s27, 0
      %p116 = por %p114, %p115
      %p117 = scmp.ne.s32.totalorder %s105, %s106
      %p118 = scmp.eq.s32.totalorder %s28, 1
      %p119 = por %p117, %p118
      %p121 = scmp.ne.s32.totalorder %s106, %s120
      %p122 = scmp.eq.s32.totalorder %s28, 0
      %p123 = por %p121, %p122
      %s125 = sadd.s32 %s124, 1
      %p128 = scmp.eq.s32.totalorder %s22, 1
      %p129 = scmp.ne.s32.totalorder %s124, %s126
      %p130 = scmp.eq.s32.totalorder %s22, 0
      %p131 = por %p129, %p130
      %p132 = scmp.ne.s32.totalorder %s124, %s126
      %p133 = scmp.eq.s32.totalorder %s27, 1
      %p134 = por %p132, %p133
      %p135 = scmp.ne.s32.totalorder %s126, %s127
      %p136 = scmp.eq.s32.totalorder %s27, 0
      %p137 = por %p135, %p136
      %p138 = scmp.ne.s32.totalorder %s126, %s127
      %p139 = scmp.eq.s32.totalorder %s28, 1
      %p140 = por %p138, %p139
      %p142 = scmp.ne.s32.totalorder %s127, %s141
      %p143 = scmp.eq.s32.totalorder %s28, 0
      %p144 = por %p142, %p143
      %s146 = sadd.s32 %s145, 1
      %p149 = scmp.eq.s32.totalorder %s22, 1
      %p150 = scmp.ne.s32.totalorder %s145, %s147
      %p151 = scmp.eq.s32.totalorder %s22, 0
      %p152 = por %p150, %p151
      %p153 = scmp.ne.s32.totalorder %s145, %s147
      %p154 = scmp.eq.s32.totalorder %s27, 1
      %p155 = por %p153, %p154
      %p156 = scmp.ne.s32.totalorder %s147, %s148
      %p157 = scmp.eq.s32.totalorder %s27, 0
      %p158 = por %p156, %p157
      %p159 = scmp.ne.s32.totalorder %s147, %s148
      %p160 = scmp.eq.s32.totalorder %s28, 1
      %p161 = por %p159, %p160
      %p163 = scmp.ne.s32.totalorder %s148, %s162
      %p164 = scmp.eq.s32.totalorder %s28, 0
      %p165 = por %p163, %p164
      %s167 = sadd.s32 %s166, 1
      %p170 = scmp.eq.s32.totalorder %s22, 1
      %p171 = scmp.ne.s32.totalorder %s166, %s168
      %p172 = scmp.eq.s32.totalorder %s22, 0
      %p173 = por %p171, %p172
      %p174 = scmp.ne.s32.totalorder %s166, %s168
      %p175 = scmp.eq.s32.totalorder %s27, 1
      %p176 = por %p174, %p175
      %p177 = scmp.ne.s32.totalorder %s168, %s169
      %p178 = scmp.eq.s32.totalorder %s27, 0
      %p179 = por %p177, %p178
      %p180 = scmp.ne.s32.totalorder %s168, %s169
      %p181 = scmp.eq.s32.totalorder %s28, 1
      %p182 = por %p180, %p181
      %p184 = scmp.ne.s32.totalorder %s169, %s183
      %p185 = scmp.eq.s32.totalorder %s28, 0
      %p186 = por %p184, %p185
      %s188 = sadd.s32 %s187, 1
      %p191 = scmp.eq.s32.totalorder %s22, 1
      %p192 = scmp.ne.s32.totalorder %s187, %s189
      %p193 = scmp.eq.s32.totalorder %s22, 0
      %p194 = por %p192, %p193
      %p195 = scmp.ne.s32.totalorder %s187, %s189
      %p196 = scmp.eq.s32.totalorder %s27, 1
      %p197 = por %p195, %p196
      %p198 = scmp.ne.s32.totalorder %s189, %s190
      %p199 = scmp.eq.s32.totalorder %s27, 0
      %p200 = por %p198, %p199
      %p201 = scmp.ne.s32.totalorder %s189, %s190
      %p202 = scmp.eq.s32.totalorder %s28, 1
      %p203 = por %p201, %p202
      %p205 = scmp.ne.s32.totalorder %s190, %s204
      %p206 = scmp.eq.s32.totalorder %s28, 0
      %p207 = por %p205, %p206
      %s209 = sadd.s32 %s208, 1
      %p212 = scmp.eq.s32.totalorder %s22, 1
      %p213 = scmp.ne.s32.totalorder %s208, %s210
      %p214 = scmp.eq.s32.totalorder %s22, 0
      %p215 = por %p213, %p214
      %p216 = scmp.ne.s32.totalorder %s208, %s210
      %p217 = scmp.eq.s32.totalorder %s27, 1
      %p218 = por %p216, %p217
      %p219 = scmp.ne.s32.totalorder %s210, %s211
      %p220 = scmp.eq.s32.totalorder %s27, 0
      %p221 = por %p219, %p220
      %p222 = scmp.ne.s32.totalorder %s210, %s211
      %p223 = scmp.eq.s32.totalorder %s28, 1
      %p224 = por %p222, %p223
      %p226 = scmp.ne.s32.totalorder %s211, %s225
      %p227 = scmp.eq.s32.totalorder %s28, 0
      %p228 = por %p226, %p227
      %s230 = sadd.s32 %s229, 1
      %p233 = scmp.eq.s32.totalorder %s22, 1
      %p234 = scmp.ne.s32.totalorder %s229, %s231
      %p235 = scmp.eq.s32.totalorder %s22, 0
      %p236 = por %p234, %p235
      %p237 = scmp.ne.s32.totalorder %s229, %s231
      %p238 = scmp.eq.s32.totalorder %s27, 1
      %p239 = por %p237, %p238
      %p240 = scmp.ne.s32.totalorder %s231, %s232
      %p241 = scmp.eq.s32.totalorder %s27, 0
      %p242 = por %p240, %p241
      %p243 = scmp.ne.s32.totalorder %s231, %s232
      %p244 = scmp.eq.s32.totalorder %s28, 1
      %p245 = por %p243, %p244
      %p247 = scmp.ne.s32.totalorder %s232, %s246
      %p248 = scmp.eq.s32.totalorder %s28, 0
      %p249 = por %p247, %p248
      %s251 = sadd.s32 %s250, 1
      %p254 = scmp.eq.s32.totalorder %s22, 1
      %p255 = scmp.ne.s32.totalorder %s250, %s252
      %p256 = scmp.eq.s32.totalorder %s22, 0
      %p257 = por %p255, %p256
      %p258 = scmp.ne.s32.totalorder %s250, %s252
      %p259 = scmp.eq.s32.totalorder %s27, 1
      %p260 = por %p258, %p259
      %p261 = scmp.ne.s32.totalorder %s252, %s253
      %p262 = scmp.eq.s32.totalorder %s27, 0
      %p263 = por %p261, %p262
      %p264 = scmp.ne.s32.totalorder %s252, %s253
      %p265 = scmp.eq.s32.totalorder %s28, 1
      %p266 = por %p264, %p265
      %p268 = scmp.ne.s32.totalorder %s253, %s267
      %p269 = scmp.eq.s32.totalorder %s28, 0
      %p270 = por %p268, %p269
      %s272 = sadd.s32 %s271, 1
      %p275 = scmp.eq.s32.totalorder %s22, 1
      %p276 = scmp.ne.s32.totalorder %s271, %s273
      %p277 = scmp.eq.s32.totalorder %s22, 0
      %p278 = por %p276, %p277
      %p279 = scmp.ne.s32.totalorder %s271, %s273
      %p280 = scmp.eq.s32.totalorder %s27, 1
      %p281 = por %p279, %p280
      %p282 = scmp.ne.s32.totalorder %s273, %s274
      %p283 = scmp.eq.s32.totalorder %s27, 0
      %p284 = por %p282, %p283
      %p285 = scmp.ne.s32.totalorder %s273, %s274
      %p286 = scmp.eq.s32.totalorder %s28, 1
      %p287 = por %p285, %p286
      %p289 = scmp.ne.s32.totalorder %s274, %s288
      %p290 = scmp.eq.s32.totalorder %s28, 0
      %p291 = por %p289, %p290
      %s293 = sadd.s32 %s292, 1
      %p296 = scmp.eq.s32.totalorder %s22, 1
      %p297 = scmp.ne.s32.totalorder %s292, %s294
      %p298 = scmp.eq.s32.totalorder %s22, 0
      %p299 = por %p297, %p298
      %p300 = scmp.ne.s32.totalorder %s292, %s294
      %p301 = scmp.eq.s32.totalorder %s27, 1
      %p302 = por %p300, %p301
      %p303 = scmp.ne.s32.totalorder %s294, %s295
      %p304 = scmp.eq.s32.totalorder %s27, 0
      %p305 = por %p303, %p304
      %p306 = scmp.ne.s32.totalorder %s294, %s295
      %p307 = scmp.eq.s32.totalorder %s28, 1
      %p308 = por %p306, %p307
      %p310 = scmp.ne.s32.totalorder %s295, %s309
      %p311 = scmp.eq.s32.totalorder %s28, 0
      %p312 = por %p310, %p311
      %s313 = ssub.s32 %s22, %s29
      %p314 = scmp.eq.s32.totalorder %s313, 0
      %s316 = sadd.s32 %s315, 1
      %s317 = scalar_select %p314, %s315, %s316
      %p320 = pneg %p314
      %p321 = scmp.eq.s32.totalorder %s22, 1
      %p322 = por %p320, %p321
      %p323 = scmp.ne.s32.totalorder %s315, %s318
      %p324 = scmp.eq.s32.totalorder %s22, 0
      %p325 = por %p323, %p324
      %p326 = scmp.ne.s32.totalorder %s315, %s318
      %p327 = scmp.eq.s32.totalorder %s27, 1
      %p328 = por %p326, %p327
      %p329 = scmp.ne.s32.totalorder %s318, %s319
      %p330 = scmp.eq.s32.totalorder %s27, 0
      %p331 = por %p329, %p330
      %p332 = scmp.ne.s32.totalorder %s318, %s319
      %p333 = scmp.eq.s32.totalorder %s28, 1
      %p334 = por %p332, %p333
      %p336 = scmp.ne.s32.totalorder %s319, %s335
      %p337 = scmp.eq.s32.totalorder %s28, 0
      %p338 = por %p336, %p337
      %p339 = scmp.le.s32.totalorder 1, %s22
      %p340 = scmp.lt.s32.totalorder %s22, 3
      %p341 = pnand %p339, %p340
      %p342 = pneg %p341
      // Predicated region
      $region9: #{tpu_custom_call.1} parent=5 // pred_check
        _
      $region10: #{tpu_custom_call.1} parent=5 // pred_check_branch
        %344 = sbr.rel (%p341) target = $region12
      $region11: #{tpu_custom_call.1} parent=5 // pred_region
        %s345 = ssub.s32 %s22, 1
        // Predicated region
        $region13: #{tpu_custom_call.1} parent=11 // pred_check
          %p346 = pneg %p95
        $region14: #{tpu_custom_call.1} parent=11 // pred_check_branch
          %348 = sbr.rel (%p346) target = $region16
        $region15: #{tpu_custom_call.1} parent=11 // pred_region
          _
        $region16: #{tpu_custom_call.1} parent=11 // pred_fallthru
          _
        // Predicated region
        $region17: #{tpu_custom_call.1} parent=11 // pred_check
          %p349 = pneg %p116
        $region18: #{tpu_custom_call.1} parent=11 // pred_check_branch
          %351 = sbr.rel (%p349) target = $region20
        $region19: #{tpu_custom_call.1} parent=11 // pred_region
          _
        $region20: #{tpu_custom_call.1} parent=11 // pred_fallthru
          _
        // Predicated region
        $region21: #{tpu_custom_call.1} parent=11 // pred_check
          %p352 = pneg %p137
        $region22: #{tpu_custom_call.1} parent=11 // pred_check_branch
          %354 = sbr.rel (%p352) target = $region24
        $region23: #{tpu_custom_call.1} parent=11 // pred_region
          _
        $region24: #{tpu_custom_call.1} parent=11 // pred_fallthru
          _
        // Predicated region
        $region25: #{tpu_custom_call.1} parent=11 // pred_check
          %p355 = pneg %p158
        $region26: #{tpu_custom_call.1} parent=11 // pred_check_branch
          %357 = sbr.rel (%p355) target = $region28
        $region27: #{tpu_custom_call.1} parent=11 // pred_region
          _
        $region28: #{tpu_custom_call.1} parent=11 // pred_fallthru
          _
        // Predicated region
        $region29: #{tpu_custom_call.1} parent=11 // pred_check
          %p358 = pneg %p179
        $region30: #{tpu_custom_call.1} parent=11 // pred_check_branch
          %360 = sbr.rel (%p358) target = $region32
        $region31: #{tpu_custom_call.1} parent=11 // pred_region
          _
        $region32: #{tpu_custom_call.1} parent=11 // pred_fallthru
          _
        // Predicated region
        $region33: #{tpu_custom_call.1} parent=11 // pred_check
          %p361 = pneg %p200
        $region34: #{tpu_custom_call.1} parent=11 // pred_check_branch
          %363 = sbr.rel (%p361) target = $region36
        $region35: #{tpu_custom_call.1} parent=11 // pred_region
          _
        $region36: #{tpu_custom_call.1} parent=11 // pred_fallthru
          _
        // Predicated region
        $region37: #{tpu_custom_call.1} parent=11 // pred_check
          %p364 = pneg %p221
        $region38: #{tpu_custom_call.1} parent=11 // pred_check_branch
          %366 = sbr.rel (%p364) target = $region40
        $region39: #{tpu_custom_call.1} parent=11 // pred_region
          _
        $region40: #{tpu_custom_call.1} parent=11 // pred_fallthru
          _
        // Predicated region
        $region41: #{tpu_custom_call.1} parent=11 // pred_check
          %p367 = pneg %p242
        $region42: #{tpu_custom_call.1} parent=11 // pred_check_branch
          %369 = sbr.rel (%p367) target = $region44
        $region43: #{tpu_custom_call.1} parent=11 // pred_region
          _
        $region44: #{tpu_custom_call.1} parent=11 // pred_fallthru
          _
        // Predicated region
        $region45: #{tpu_custom_call.1} parent=11 // pred_check
          %p370 = pneg %p263
        $region46: #{tpu_custom_call.1} parent=11 // pred_check_branch
          %372 = sbr.rel (%p370) target = $region48
        $region47: #{tpu_custom_call.1} parent=11 // pred_region
          _
        $region48: #{tpu_custom_call.1} parent=11 // pred_fallthru
          _
        // Predicated region
        $region49: #{tpu_custom_call.1} parent=11 // pred_check
          %p373 = pneg %p284
        $region50: #{tpu_custom_call.1} parent=11 // pred_check_branch
          %375 = sbr.rel (%p373) target = $region52
        $region51: #{tpu_custom_call.1} parent=11 // pred_region
          _
        $region52: #{tpu_custom_call.1} parent=11 // pred_fallthru
          _
        // Predicated region
        $region53: #{tpu_custom_call.1} parent=11 // pred_check
          %p376 = pneg %p305
        $region54: #{tpu_custom_call.1} parent=11 // pred_check_branch
          %378 = sbr.rel (%p376) target = $region56
        $region55: #{tpu_custom_call.1} parent=11 // pred_region
          _
        $region56: #{tpu_custom_call.1} parent=11 // pred_fallthru
          _
      $region12: #{tpu_custom_call.1} parent=5 // pred_fallthru
        _
      %p379 = scmp.lt.s32.totalorder %s22, 2
      // Predicated region
      $region57: #{tpu_custom_call.1} parent=5 // pred_check
        %p380 = pneg %p379
      $region58: #{tpu_custom_call.1} parent=5 // pred_check_branch
        %382 = sbr.rel (%p380) target = $region60
      $region59: #{tpu_custom_call.1} parent=5 // pred_region
        // Predicated region
        $region61: #{tpu_custom_call.1} parent=59 // pred_check
          %p383 = pneg %p42
        $region62: #{tpu_custom_call.1} parent=59 // pred_check_branch
          %385 = sbr.rel (%p383) target = $region64
        $region63: #{tpu_custom_call.1} parent=59 // pred_region
          %p386 = scmp.lt.s32.totalorder %s22, 1
          %s387 = scalar_select %p386, %s22, 1
          %s388 = smul.addr %s387, 8
          %s389 = smul.addr %s388, 8
          %s390 = scalar_lea.vmem %s0, %s389
        $region64: #{tpu_custom_call.1} parent=59 // pred_fallthru
          _
        // Predicated region
        $region65: #{tpu_custom_call.1} parent=59 // pred_check
          %p391 = pneg %p68
        $region66: #{tpu_custom_call.1} parent=59 // pred_check_branch
          %393 = sbr.rel (%p391) target = $region68
        $region67: #{tpu_custom_call.1} parent=59 // pred_region
          %p394 = scmp.lt.s32.totalorder %s22, 1
          %s395 = scalar_select %p394, %s22, 1
          %s396 = smul.addr %s395, 2
          %s397 = smul.addr %s396, 4
          %s398 = scalar_lea.vmem %s1, %s397
        $region68: #{tpu_custom_call.1} parent=59 // pred_fallthru
          _
      $region60: #{tpu_custom_call.1} parent=5 // pred_fallthru
        _
      %p399 = scmp.le.s32.totalorder 1, %s22
      %p400 = scmp.lt.s32.totalorder %s22, 3
      %p401 = pnand %p399, %p400
      %p402 = pneg %p401
      // Predicated region
      $region69: #{tpu_custom_call.1} parent=5 // pred_check
        _
      $region70: #{tpu_custom_call.1} parent=5 // pred_check_branch
        %404 = sbr.rel (%p401) target = $region72
      $region71: #{tpu_custom_call.1} parent=5 // pred_region
        %s405 = ssub.s32 %s22, 1
        %p406 = scmp.lt.s32.totalorder %s27, 1
        %s407 = scalar_select %p406, %s27, 1
        %s408 = smul.addr %s407, 8
        %s409 = smul.addr %s408, 8
        %s410 = scalar_lea.vmem %s0, %s409
        %p411 = pneg %p48
        %p412 = pneg %p45
        %p413 = scmp.lt.s32.totalorder %s27, 1
        %s414 = scalar_select %p413, %s27, 1
        %s415 = smul.addr %s414, 2
        %s416 = smul.addr %s415, 4
        %s417 = scalar_lea.vmem %s1, %s416
        %p418 = pneg %p74
        %p419 = pneg %p71
        %p420 = pneg %p95
        %p421 = pneg %p92
        %p422 = pneg %p116
        %p423 = pneg %p113
        %p424 = pneg %p137
        %p425 = pneg %p134
        %p426 = pneg %p158
        %p427 = pneg %p155
        %p428 = pneg %p179
        %p429 = pneg %p176
        %p430 = pneg %p200
        %p431 = pneg %p197
        %p432 = pneg %p221
        %p433 = pneg %p218
        %p434 = pneg %p242
        %p435 = pneg %p239
        %p436 = pneg %p263
        %p437 = pneg %p260
        %p438 = pneg %p284
        %p439 = pneg %p281
        %p440 = pneg %p305
        %p441 = pneg %p302
        %p442 = pneg %p331
        %p443 = pneg %p328
        %s444 = sand.u32 %s318, 1
        %s445 = scalar_lea.sflag [#allocation3], %s444
        %s446 = sand.u32 %s318, 1
        %s447 = smul.addr %s446, 64
        %s448 = scalar_lea.vmem [#allocation2], %s447
        %p449 = scmp.lt.s32.totalorder %s27, 1
        %s450 = scalar_select %p449, %s27, 1
        %s451 = smul.addr %s450, 8
        %s452 = smul.addr %s451, 8
        %s453 = scalar_lea.vmem %s0, %s452
        %p454 = scmp.lt.s32.totalorder %s27, 1
        %s455 = scalar_select %p454, %s27, 1
        %s456 = smul.addr %s455, 2
        %s457 = smul.addr %s456, 4
        %s458 = scalar_lea.vmem %s1, %s457
        %v460 = vld [vmem:[%s453] sm:$0xff]
        %v461 = vld [vmem:[%s453 + $0x8] sm:$0xff]
        %v462 = vld [vmem:[%s453 + $0x10] sm:$0xff]
        %v463 = vld [vmem:[%s453 + $0x18] sm:$0xff]
        %v464 = vld [vmem:[%s453 + $0x20] sm:$0xff]
        %v465 = vld [vmem:[%s453 + $0x28] sm:$0xff]
        %v466 = vld [vmem:[%s453 + $0x30] sm:$0xff]
        %v467 = vld [vmem:[%s453 + $0x38] sm:$0xff]
        %v468 = vld [vmem:[%s458] sm:$0xf]
        %v469 = vld [vmem:[%s458 + $0x4] sm:$0xf]
        %v470 = vld [vmem:[%s2] sm:$0x1]
        %v471 = vld [vmem:[%s3] sm:$0xf]
        %v472 = vld [vmem:[%s3 + $0x4] sm:$0xf]
        %v473 = vld [vmem:[%s3 + $0x8] sm:$0xf]
        %v474 = vld [vmem:[%s3 + $0xc] sm:$0xf]
        %v475 = vld [vmem:[%s3 + $0x10] sm:$0xf]
        %v476 = vld [vmem:[%s3 + $0x14] sm:$0xf]
        %v477 = vld [vmem:[%s3 + $0x18] sm:$0xf]
        %v478 = vld [vmem:[%s3 + $0x1c] sm:$0xf]
        %v479 = vld [vmem:[%s3 + $0x20] sm:$0xf]
        %v480 = vld [vmem:[%s3 + $0x24] sm:$0xf]
        %v481 = vld [vmem:[%s3 + $0x28] sm:$0xf]
        %v482 = vld [vmem:[%s3 + $0x2c] sm:$0xf]
        %v483 = vld [vmem:[%s3 + $0x30] sm:$0xf]
        %v484 = vld [vmem:[%s3 + $0x34] sm:$0xf]
        %v485 = vld [vmem:[%s3 + $0x38] sm:$0xf]
        %v486 = vld [vmem:[%s3 + $0x3c] sm:$0xf]
        %v487 = vld [vmem:[%s4] sm:$0xf]
        %v488 = vld [vmem:[%s4 + $0x4] sm:$0xf]
        %v489 = vld [vmem:[%s4 + $0x8] sm:$0xf]
        %v490 = vld [vmem:[%s4 + $0xc] sm:$0xf]
        %v491 = vld [vmem:[%s4 + $0x10] sm:$0xf]
        %v492 = vld [vmem:[%s4 + $0x14] sm:$0xf]
        %v493 = vld [vmem:[%s4 + $0x18] sm:$0xf]
        %v494 = vld [vmem:[%s4 + $0x1c] sm:$0xf]
        %v495 = vld [vmem:[%s4 + $0x20] sm:$0xf]
        %v496 = vld [vmem:[%s4 + $0x24] sm:$0xf]
        %v497 = vld [vmem:[%s4 + $0x28] sm:$0xf]
        %v498 = vld [vmem:[%s4 + $0x2c] sm:$0xf]
        %v499 = vld [vmem:[%s4 + $0x30] sm:$0xf]
        %v500 = vld [vmem:[%s4 + $0x34] sm:$0xf]
        %v501 = vld [vmem:[%s4 + $0x38] sm:$0xf]
        %v502 = vld [vmem:[%s4 + $0x3c] sm:$0xf]
        %v503 = vld [vmem:[%s5] sm:$0xff]
        %v504 = vld [vmem:[%s5 + $0x8] sm:$0xff]
        %v505 = vld [vmem:[%s5 + $0x10] sm:$0xff]
        %v506 = vld [vmem:[%s5 + $0x18] sm:$0xff]
        %v507 = vld [vmem:[%s5 + $0x20] sm:$0xff]
        %v508 = vld [vmem:[%s5 + $0x28] sm:$0xff]
        %v509 = vld [vmem:[%s5 + $0x30] sm:$0xff]
        %v510 = vld [vmem:[%s5 + $0x38] sm:$0xff]
        %v511 = vld [vmem:[%s6] sm:$0xf]
        %v512 = vld [vmem:[%s6 + $0x4] sm:$0xf]
        %v513 = vld [vmem:[%s6 + $0x8] sm:$0xf]
        %v514 = vld [vmem:[%s6 + $0xc] sm:$0xf]
        %v515 = vld [vmem:[%s7] sm:$0xff]
        %v516 = vld [vmem:[%s7 + $0x8] sm:$0xff]
        %v517 = vld [vmem:[%s7 + $0x10] sm:$0xff]
        %v518 = vld [vmem:[%s7 + $0x18] sm:$0xff]
        %v519 = vld [vmem:[%s7 + $0x20] sm:$0xff]
        %v520 = vld [vmem:[%s7 + $0x28] sm:$0xff]
        %v521 = vld [vmem:[%s7 + $0x30] sm:$0xff]
        %v522 = vld [vmem:[%s7 + $0x38] sm:$0xff]
        %v523 = vld [vmem:[%s7 + $0x40] sm:$0xff]
        %v524 = vld [vmem:[%s7 + $0x48] sm:$0xff]
        %v525 = vld [vmem:[%s7 + $0x50] sm:$0xff]
        %v526 = vld [vmem:[%s7 + $0x58] sm:$0xff]
        %v527 = vld [vmem:[%s7 + $0x60] sm:$0xff]
        %v528 = vld [vmem:[%s7 + $0x68] sm:$0xff]
        %v529 = vld [vmem:[%s7 + $0x70] sm:$0xff]
        %v530 = vld [vmem:[%s7 + $0x78] sm:$0xff]
        %v531 = vld [vmem:[%s7 + $0x80] sm:$0xff]
        %v532 = vld [vmem:[%s7 + $0x88] sm:$0xff]
        %v533 = vld [vmem:[%s7 + $0x90] sm:$0xff]
        %v534 = vld [vmem:[%s7 + $0x98] sm:$0xff]
        %v535 = vld [vmem:[%s7 + $0xa0] sm:$0xff]
        %v536 = vld [vmem:[%s7 + $0xa8] sm:$0xff]
        %v537 = vld [vmem:[%s7 + $0xb0] sm:$0xff]
        %v538 = vld [vmem:[%s7 + $0xb8] sm:$0xff]
        %v539 = vld [vmem:[%s7 + $0xc0] sm:$0xff]
        %v540 = vld [vmem:[%s7 + $0xc8] sm:$0xff]
        %v541 = vld [vmem:[%s7 + $0xd0] sm:$0xff]
        %v542 = vld [vmem:[%s7 + $0xd8] sm:$0xff]
        %v543 = vpack.c.bf16 %v461, %v460
        %v544 = vpack.c.bf16 %v463, %v462
        %v561 = vunpack.c.l.b16 %v487
        %v562 = vunpack.c.l.b16 %v488
        %v563 = vunpack.c.l.b16 %v489
        %v564 = vunpack.c.l.b16 %v490
        %v565 = vunpack.c.l.b16 %v491
        %v566 = vunpack.c.l.b16 %v492
        %v567 = vunpack.c.l.b16 %v493
        %v568 = vunpack.c.l.b16 %v494
        %v569 = vunpack.c.l.b16 %v495
        %v570 = vunpack.c.l.b16 %v496
        %v571 = vunpack.c.l.b16 %v497
        %v572 = vunpack.c.l.b16 %v498
        %v573 = vunpack.c.l.b16 %v499
        %v574 = vunpack.c.l.b16 %v500
        %v575 = vunpack.c.l.b16 %v501
        %v576 = vunpack.c.l.b16 %v502
        %v577 = vpack.c.b16 %v562, %v561
        %v578 = vpack.c.b16 %v564, %v563
        %v579 = vpack.c.b16 %v566, %v565
        %v580 = vpack.c.b16 %v568, %v567
        %v581 = vpack.c.b16 %v570, %v569
        %v582 = vpack.c.b16 %v572, %v571
        %v583 = vpack.c.b16 %v574, %v573
        %v584 = vpack.c.b16 %v576, %v575
        %v587 = vunpack.c.l.b16 %v468
        %v588 = vunpack.c.l.b16 %v469
        %v589 = vpack.c.b16 %v588, %v587
        %vm591 = vcmask 130048
        %v593 = vsel %vm591, %v577, 0
        %v596 = vsel %vm591, %v578, 0
        %v599 = vsel %vm591, %v579, 0
        %v602 = vsel %vm591, %v580, 0
        %v605 = vsel %vm591, %v581, 0
        %v608 = vsel %vm591, %v582, 0
        %v611 = vsel %vm591, %v583, 0
        %v614 = vsel %vm591, %v584, 0
        %616 = vmatprep.subr.bf16.mxu0 0
        %617 = vmatpush1.bf16.msra.mxu0 %v589
        %618 = vmatprep.subr.bf16.mxu0 0
        %619 = vmatpush1.bf16.msra.mxu0 0
        %620 = vmatprep.subr.bf16.mxu0 0
        %621 = vmatpush1.bf16.msra.mxu0 0
        %622 = vmatprep.subr.bf16.mxu0 0
        %623 = vmatpush1.bf16.msra.mxu0 0
        %624 = vmatprep.subr.bf16.mxu0 0
        %625 = vmatpush1.bf16.msra.mxu0 0
        %626 = vmatprep.subr.bf16.mxu0 0
        %627 = vmatpush1.bf16.msra.mxu0 0
        %628 = vmatprep.subr.bf16.mxu0 0
        %629 = vmatpush1.bf16.msra.mxu0 0
        %630 = vmatprep.subr.bf16.mxu0 0
        %631 = vmatpush1.bf16.msra.mxu0 0
        %632 = vmatprep.subr.bf16.mxu0 0
        %633 = vmatpush1.bf16.msra.mxu0 0
        %634 = vmatprep.subr.bf16.mxu0 0
        %635 = vmatpush1.bf16.msra.mxu0 0
        %636 = vmatprep.subr.bf16.mxu0 0
        %637 = vmatpush1.bf16.msra.mxu0 0
        %638 = vmatprep.subr.bf16.mxu0 0
        %639 = vmatpush1.bf16.msra.mxu0 0
        %640 = vmatprep.subr.bf16.mxu0 0
        %641 = vmatpush1.bf16.msra.mxu0 0
        %642 = vmatprep.subr.bf16.mxu0 0
        %643 = vmatpush1.bf16.msra.mxu0 0
        %644 = vmatprep.subr.bf16.mxu0 0
        %645 = vmatpush1.bf16.msra.mxu0 0
        %646 = vmatprep.subr.bf16.mxu0 0
        %647 = vmatpush1.bf16.msra.mxu0 0
        %648 = vmatprep.mubr.bf16.mxu0 0
        %649 = vmatmul.mubr.bf16.gmra.mrb[0].mxu0 %v593
        %v650 = vpop.f32.mrb[0].mxu0
        %v651 = vadd.f32 0.0, %v650
        %v652 = vpop.f32.mrb[0].mxu0
        %v653 = vpop.f32.mrb[0].mxu0
        %v654 = vadd.f32 0.0, %v653
        %v655 = vpop.f32.mrb[0].mxu0
        %656 = vmatprep.mubr.bf16.mxu0 0
        %657 = vmatmul.mubr.bf16.gmra.mrb[0].mxu0 %v596
        %v658 = vpop.f32.mrb[0].mxu0
        %v659 = vadd.f32 0.0, %v658
        %v660 = vpop.f32.mrb[0].mxu0
        %v661 = vpop.f32.mrb[0].mxu0
        %v662 = vadd.f32 0.0, %v661
        %v663 = vpop.f32.mrb[0].mxu0
        %664 = vmatprep.mubr.bf16.mxu0 0
        %665 = vmatmul.mubr.bf16.gmra.mrb[0].mxu0 %v599
        %v666 = vpop.f32.mrb[0].mxu0
        %v667 = vadd.f32 0.0, %v666
        %v668 = vpop.f32.mrb[0].mxu0
        %v669 = vpop.f32.mrb[0].mxu0
        %v670 = vadd.f32 0.0, %v669
        %v671 = vpop.f32.mrb[0].mxu0
        %672 = vmatprep.mubr.bf16.mxu0 0
        %673 = vmatmul.mubr.bf16.gmra.mrb[0].mxu0 %v602
        %v674 = vpop.f32.mrb[0].mxu0
        %v675 = vadd.f32 0.0, %v674
        %v676 = vpop.f32.mrb[0].mxu0
        %v677 = vpop.f32.mrb[0].mxu0
        %v678 = vadd.f32 0.0, %v677
        %v679 = vpop.f32.mrb[0].mxu0
        %680 = vmatprep.mubr.bf16.mxu0 0
        %681 = vmatmul.mubr.bf16.gmra.mrb[0].mxu0 %v605
        %v682 = vpop.f32.mrb[0].mxu0
        %v683 = vadd.f32 0.0, %v682
        %v684 = vpop.f32.mrb[0].mxu0
        %v685 = vpop.f32.mrb[0].mxu0
        %v686 = vadd.f32 0.0, %v685
        %v687 = vpop.f32.mrb[0].mxu0
        %688 = vmatprep.mubr.bf16.mxu0 0
        %689 = vmatmul.mubr.bf16.gmra.mrb[0].mxu0 %v608
        %v690 = vpop.f32.mrb[0].mxu0
        %v691 = vadd.f32 0.0, %v690
        %v692 = vpop.f32.mrb[0].mxu0
        %v693 = vpop.f32.mrb[0].mxu0
        %v694 = vadd.f32 0.0, %v693
        %v695 = vpop.f32.mrb[0].mxu0
        %696 = vmatprep.mubr.bf16.mxu0 0
        %697 = vmatmul.mubr.bf16.gmra.mrb[0].mxu0 %v611
        %v698 = vpop.f32.mrb[0].mxu0
        %v699 = vadd.f32 0.0, %v698
        %v700 = vpop.f32.mrb[0].mxu0
        %v701 = vpop.f32.mrb[0].mxu0
        %v702 = vadd.f32 0.0, %v701
        %v703 = vpop.f32.mrb[0].mxu0
        %704 = vmatprep.mubr.bf16.mxu0 0
        %705 = vmatmul.mubr.bf16.gmra.mrb[0].mxu0 %v614
        %v706 = vpop.f32.mrb[0].mxu0
        %v707 = vadd.f32 0.0, %v706
        %v708 = vpop.f32.mrb[0].mxu0
        %v709 = vpop.f32.mrb[0].mxu0
        %v710 = vadd.f32 0.0, %v709
        %v711 = vpop.f32.mrb[0].mxu0
        %712 = vdwg.mxu0
        %v729 = vunpack.c.l.b16 %v471
        %v730 = vunpack.c.l.b16 %v472
        %v731 = vunpack.c.l.b16 %v473
        %v732 = vunpack.c.l.b16 %v474
        %v733 = vunpack.c.l.b16 %v475
        %v734 = vunpack.c.l.b16 %v476
        %v735 = vunpack.c.l.b16 %v477
        %v736 = vunpack.c.l.b16 %v478
        %v737 = vunpack.c.l.b16 %v479
        %v738 = vunpack.c.l.b16 %v480
        %v739 = vunpack.c.l.b16 %v481
        %v740 = vunpack.c.l.b16 %v482
        %v741 = vunpack.c.l.b16 %v483
        %v742 = vunpack.c.l.b16 %v484
        %v743 = vunpack.c.l.b16 %v485
        %v744 = vunpack.c.l.b16 %v486
        %v745 = vpack.c.b16 %v730, %v729
        %v746 = vpack.c.b16 %v732, %v731
        %v747 = vpack.c.b16 %v734, %v733
        %v748 = vpack.c.b16 %v736, %v735
        %v749 = vpack.c.b16 %v738, %v737
        %v750 = vpack.c.b16 %v740, %v739
        %v751 = vpack.c.b16 %v742, %v741
        %v752 = vpack.c.b16 %v744, %v743
        %vm753 = vcmask 261120
        %v755 = vsel %vm753, %v745, 0
        %v758 = vsel %vm753, %v746, 0
        %v761 = vsel %vm753, %v747, 0
        %v764 = vsel %vm753, %v748, 0
        %v767 = vsel %vm753, %v749, 0
        %v770 = vsel %vm753, %v750, 0
        %v773 = vsel %vm753, %v751, 0
        %v776 = vsel %vm753, %v752, 0
        %778 = vmatprep.subr.bf16.mxu0 0
        %779 = vmatpush1.bf16.msra.mxu0 %v543
        %780 = vmatprep.subr.bf16.mxu0 0
        %781 = vmatpush1.bf16.msra.mxu0 %v544
        %782 = vmatprep.subr.bf16.mxu0 0
        %783 = vmatpush1.bf16.msra.mxu0 0
        %784 = vmatprep.subr.bf16.mxu0 0
        %785 = vmatpush1.bf16.msra.mxu0 0
        %786 = vmatprep.subr.bf16.mxu0 0
        %787 = vmatpush1.bf16.msra.mxu0 0
        %788 = vmatprep.subr.bf16.mxu0 0
        %789 = vmatpush1.bf16.msra.mxu0 0
        %790 = vmatprep.subr.bf16.mxu0 0
        %791 = vmatpush1.bf16.msra.mxu0 0
        %792 = vmatprep.subr.bf16.mxu0 0
        %793 = vmatpush1.bf16.msra.mxu0 0
        %794 = vmatprep.subr.bf16.mxu0 0
        %795 = vmatpush1.bf16.msra.mxu0 0
        %796 = vmatprep.subr.bf16.mxu0 0
        %797 = vmatpush1.bf16.msra.mxu0 0
        %798 = vmatprep.subr.bf16.mxu0 0
        %799 = vmatpush1.bf16.msra.mxu0 0
        %800 = vmatprep.subr.bf16.mxu0 0
        %801 = vmatpush1.bf16.msra.mxu0 0
        %802 = vmatprep.subr.bf16.mxu0 0
        %803 = vmatpush1.bf16.msra.mxu0 0
        %804 = vmatprep.subr.bf16.mxu0 0
        %805 = vmatpush1.bf16.msra.mxu0 0
        %806 = vmatprep.subr.bf16.mxu0 0
        %807 = vmatpush1.bf16.msra.mxu0 0
        %808 = vmatprep.subr.bf16.mxu0 0
        %809 = vmatpush1.bf16.msra.mxu0 0
        %810 = vmatprep.mubr.bf16.mxu0 0
        %811 = vmatmul.mubr.bf16.gmra.mrb[0].mxu0 %v755
        %v812 = vpop.f32.mrb[0].mxu0
        %v813 = vadd.f32 %v651, %v812
        %v814 = vpop.f32.mrb[0].mxu0
        %v815 = vpop.f32.mrb[0].mxu0
        %v816 = vadd.f32 %v654, %v815
        %v817 = vpop.f32.mrb[0].mxu0
        %818 = vmatprep.mubr.bf16.mxu0 0
        %819 = vmatmul.mubr.bf16.gmra.mrb[0].mxu0 %v758
        %v820 = vpop.f32.mrb[0].mxu0
        %v821 = vadd.f32 %v659, %v820
        %v822 = vpop.f32.mrb[0].mxu0
        %v823 = vpop.f32.mrb[0].mxu0
        %v824 = vadd.f32 %v662, %v823
        %v825 = vpop.f32.mrb[0].mxu0
        %826 = vmatprep.mubr.bf16.mxu0 0
        %827 = vmatmul.mubr.bf16.gmra.mrb[0].mxu0 %v761
        %v828 = vpop.f32.mrb[0].mxu0
        %v829 = vadd.f32 %v667, %v828
        %v830 = vpop.f32.mrb[0].mxu0
        %v831 = vpop.f32.mrb[0].mxu0
        %v832 = vadd.f32 %v670, %v831
        %v833 = vpop.f32.mrb[0].mxu0
        %834 = vmatprep.mubr.bf16.mxu0 0
        %835 = vmatmul.mubr.bf16.gmra.mrb[0].mxu0 %v764
        %v836 = vpop.f32.mrb[0].mxu0
        %v837 = vadd.f32 %v675, %v836
        %v838 = vpop.f32.mrb[0].mxu0
        %v839 = vpop.f32.mrb[0].mxu0
        %v840 = vadd.f32 %v678, %v839
        %v841 = vpop.f32.mrb[0].mxu0
        %842 = vmatprep.mubr.bf16.mxu0 0
        %843 = vmatmul.mubr.bf16.gmra.mrb[0].mxu0 %v767
        %v844 = vpop.f32.mrb[0].mxu0
        %v845 = vadd.f32 %v683, %v844
        %v846 = vpop.f32.mrb[0].mxu0
        %v847 = vpop.f32.mrb[0].mxu0
        %v848 = vadd.f32 %v686, %v847
        %v849 = vpop.f32.mrb[0].mxu0
        %850 = vmatprep.mubr.bf16.mxu0 0
        %851 = vmatmul.mubr.bf16.gmra.mrb[0].mxu0 %v770
        %v852 = vpop.f32.mrb[0].mxu0
        %v853 = vadd.f32 %v691, %v852
        %v854 = vpop.f32.mrb[0].mxu0
        %v855 = vpop.f32.mrb[0].mxu0
        %v856 = vadd.f32 %v694, %v855
        %v857 = vpop.f32.mrb[0].mxu0
        %858 = vmatprep.mubr.bf16.mxu0 0
        %859 = vmatmul.mubr.bf16.gmra.mrb[0].mxu0 %v773
        %v860 = vpop.f32.mrb[0].mxu0
        %v861 = vadd.f32 %v699, %v860
        %v862 = vpop.f32.mrb[0].mxu0
        %v863 = vpop.f32.mrb[0].mxu0
        %v864 = vadd.f32 %v702, %v863
        %v865 = vpop.f32.mrb[0].mxu0
        %866 = vmatprep.mubr.bf16.mxu0 0
        %867 = vmatmul.mubr.bf16.gmra.mrb[0].mxu0 %v776
        %v868 = vpop.f32.mrb[0].mxu0
        %v869 = vadd.f32 %v707, %v868
        %v870 = vpop.f32.mrb[0].mxu0
        %v871 = vpop.f32.mrb[0].mxu0
        %v872 = vadd.f32 %v710, %v871
        %v873 = vpop.f32.mrb[0].mxu0
        %874 = vdwg.mxu0
        %876 = vset.pattern.permute.xlu0 0
        %877 = vperm.xlu0 %876, %v515
        %v878 = vpop.permute.xlu0 %877
        %881 = vset.pattern.permute.xlu0 0
        %882 = vperm.xlu0 %881, %v516
        %v883 = vpop.permute.xlu0 %882
        %886 = vset.pattern.permute.xlu0 0
        %887 = vperm.xlu0 %886, %v517
        %v888 = vpop.permute.xlu0 %887
        %891 = vset.pattern.permute.xlu0 0
        %892 = vperm.xlu0 %891, %v518
        %v893 = vpop.permute.xlu0 %892
        %896 = vset.pattern.permute.xlu0 0
        %897 = vperm.xlu0 %896, %v519
        %v898 = vpop.permute.xlu0 %897
        %901 = vset.pattern.permute.xlu0 0
        %902 = vperm.xlu0 %901, %v520
        %v903 = vpop.permute.xlu0 %902
        %906 = vset.pattern.permute.xlu0 0
        %907 = vperm.xlu0 %906, %v521
        %v908 = vpop.permute.xlu0 %907
        %911 = vset.pattern.permute.xlu0 0
        %912 = vperm.xlu0 %911, %v522
        %v913 = vpop.permute.xlu0 %912
        %916 = vset.pattern.permute.xlu0 0
        %917 = vperm.xlu0 %916, %v523
        %v918 = vpop.permute.xlu0 %917
        %921 = vset.pattern.permute.xlu0 0
        %922 = vperm.xlu0 %921, %v524
        %v923 = vpop.permute.xlu0 %922
        %926 = vset.pattern.permute.xlu0 0
        %927 = vperm.xlu0 %926, %v525
        %v928 = vpop.permute.xlu0 %927
        %931 = vset.pattern.permute.xlu0 0
        %932 = vperm.xlu0 %931, %v526
        %v933 = vpop.permute.xlu0 %932
        %936 = vset.pattern.permute.xlu0 0
        %937 = vperm.xlu0 %936, %v527
        %v938 = vpop.permute.xlu0 %937
        %941 = vset.pattern.permute.xlu0 0
        %942 = vperm.xlu0 %941, %v528
        %v943 = vpop.permute.xlu0 %942
        %946 = vset.pattern.permute.xlu0 0
        %947 = vperm.xlu0 %946, %v529
        %v948 = vpop.permute.xlu0 %947
        %951 = vset.pattern.permute.xlu0 0
        %952 = vperm.xlu0 %951, %v530
        %v953 = vpop.permute.xlu0 %952
        %v955 = vadd.f32 %v813, %v878
        %v956 = vadd.f32 %v816, %v883
        %v957 = vadd.f32 %v821, %v888
        %v958 = vadd.f32 %v824, %v893
        %v959 = vadd.f32 %v829, %v898
        %v960 = vadd.f32 %v832, %v903
        %v961 = vadd.f32 %v837, %v908
        %v962 = vadd.f32 %v840, %v913
        %v963 = vadd.f32 %v845, %v918
        %v964 = vadd.f32 %v848, %v923
        %v965 = vadd.f32 %v853, %v928
        %v966 = vadd.f32 %v856, %v933
        %v967 = vadd.f32 %v861, %v938
        %v968 = vadd.f32 %v864, %v943
        %v969 = vadd.f32 %v869, %v948
        %v970 = vadd.f32 %v872, %v953
        %v971 = vsub.f32 0.0, %v963
        %v972 = vsub.f32 0.0, %v964
        %v973 = vsub.f32 0.0, %v965
        %v974 = vsub.f32 0.0, %v966
        %v975 = vsub.f32 0.0, %v967
        %v976 = vsub.f32 0.0, %v968
        %v977 = vsub.f32 0.0, %v969
        %v978 = vsub.f32 0.0, %v970
        %v979 = vmul.f32 %v971, 1.442695
        %v980 = vpow.pop %v979
        %v981 = vmul.f32 %v972, 1.442695
        %v982 = vpow.pop %v981
        %v983 = vmul.f32 %v973, 1.442695
        %v984 = vpow.pop %v983
        %v985 = vmul.f32 %v974, 1.442695
        %v986 = vpow.pop %v985
        %v987 = vmul.f32 %v975, 1.442695
        %v988 = vpow.pop %v987
        %v989 = vmul.f32 %v976, 1.442695
        %v990 = vpow.pop %v989
        %v991 = vmul.f32 %v977, 1.442695
        %v992 = vpow.pop %v991
        %v993 = vmul.f32 %v978, 1.442695
        %v994 = vpow.pop %v993
        %v995 = vadd.f32 %v980, 1.0
        %v996 = vadd.f32 %v982, 1.0
        %v997 = vadd.f32 %v984, 1.0
        %v998 = vadd.f32 %v986, 1.0
        %v999 = vadd.f32 %v988, 1.0
        %v1000 = vadd.f32 %v990, 1.0
        %v1001 = vadd.f32 %v992, 1.0
        %v1002 = vadd.f32 %v994, 1.0
        %v1003 = vrcp.pop %v995
        %v1004 = vmul.f32 1.0, %v1003
        %v1005 = vrcp.pop %v996
        %v1006 = vmul.f32 1.0, %v1005
        %v1007 = vrcp.pop %v997
        %v1008 = vmul.f32 1.0, %v1007
        %v1009 = vrcp.pop %v998
        %v1010 = vmul.f32 1.0, %v1009
        %v1011 = vrcp.pop %v999
        %v1012 = vmul.f32 1.0, %v1011
        %v1013 = vrcp.pop %v1000
        %v1014 = vmul.f32 1.0, %v1013
        %v1015 = vrcp.pop %v1001
        %v1016 = vmul.f32 1.0, %v1015
        %v1017 = vrcp.pop %v1002
        %v1018 = vmul.f32 1.0, %v1017
        %v1019 = vmul.f32 %v955, %v1004
        %v1020 = vmul.f32 %v956, %v1006
        %v1021 = vmul.f32 %v957, %v1008
        %v1022 = vmul.f32 %v958, %v1010
        %v1023 = vmul.f32 %v959, %v1012
        %v1024 = vmul.f32 %v960, %v1014
        %v1025 = vmul.f32 %v961, %v1016
        %v1026 = vmul.f32 %v962, %v1018
        %v1028 = vlaneseq
        %v1029 = vshrl.u32 %v1028, 7
        %v1030 = vsub.s32 0, %v1029
        %v1031 = vrot.slane %v470, %v1030
        %v1033 = vmul.f32 %v1019, %v1031
        %v1034 = vmul.f32 %v1020, %v1031
        %v1035 = vmul.f32 %v1021, %v1031
        %v1036 = vmul.f32 %v1022, %v1031
        %v1037 = vmul.f32 %v1023, %v1031
        %v1038 = vmul.f32 %v1024, %v1031
        %v1039 = vmul.f32 %v1025, %v1031
        %v1040 = vmul.f32 %v1026, %v1031
        %1049 = vrot.lane.b32.xlu0 %v1033, 3
        %v1050 = vpop.permute.xlu0 %1049
        %1051 = vrot.lane.b32.xlu0 %v1034, 3
        %v1052 = vpop.permute.xlu0 %1051
        %1053 = vrot.lane.b32.xlu0 %v1035, 3
        %v1054 = vpop.permute.xlu0 %1053
        %1055 = vrot.lane.b32.xlu0 %v1036, 3
        %v1056 = vpop.permute.xlu0 %1055
        %1057 = vrot.lane.b32.xlu0 %v1037, 3
        %v1058 = vpop.permute.xlu0 %1057
        %1059 = vrot.lane.b32.xlu0 %v1038, 3
        %v1060 = vpop.permute.xlu0 %1059
        %1061 = vrot.lane.b32.xlu0 %v1039, 3
        %v1062 = vpop.permute.xlu0 %1061
        %1063 = vrot.lane.b32.xlu0 %v1040, 3
        %v1064 = vpop.permute.xlu0 %1063
        %1074 = vset.pattern.permute.xlu0 0
        %1075 = vperm.xlu0 %1074, %v503
        %v1076 = vpop.permute.xlu0 %1075
        %1079 = vset.pattern.permute.xlu0 0
        %1080 = vperm.xlu0 %1079, %v504
        %v1081 = vpop.permute.xlu0 %1080
        %1084 = vset.pattern.permute.xlu0 0
        %1085 = vperm.xlu0 %1084, %v505
        %v1086 = vpop.permute.xlu0 %1085
        %1089 = vset.pattern.permute.xlu0 0
        %1090 = vperm.xlu0 %1089, %v506
        %v1091 = vpop.permute.xlu0 %1090
        %1094 = vset.pattern.permute.xlu0 0
        %1095 = vperm.xlu0 %1094, %v507
        %v1096 = vpop.permute.xlu0 %1095
        %1099 = vset.pattern.permute.xlu0 0
        %1100 = vperm.xlu0 %1099, %v508
        %v1101 = vpop.permute.xlu0 %1100
        %1104 = vset.pattern.permute.xlu0 0
        %1105 = vperm.xlu0 %1104, %v509
        %v1106 = vpop.permute.xlu0 %1105
        %1109 = vset.pattern.permute.xlu0 0
        %1110 = vperm.xlu0 %1109, %v510
        %v1111 = vpop.permute.xlu0 %1110
        %v1113 = vmul.f32 %v1076, %v1050
        %v1114 = vmul.f32 %v1081, %v1052
        %v1115 = vmul.f32 %v1086, %v1054
        %v1116 = vmul.f32 %v1091, %v1056
        %v1117 = vmul.f32 %v1096, %v1058
        %v1118 = vmul.f32 %v1101, %v1060
        %v1119 = vmul.f32 %v1106, %v1062
        %v1120 = vmul.f32 %v1111, %v1064
        %1122 = vset.pattern.permute.xlu0 0
        %1123 = vperm.xlu0 %1122, %v531
        %v1124 = vpop.permute.xlu0 %1123
        %1127 = vset.pattern.permute.xlu0 0
        %1128 = vperm.xlu0 %1127, %v532
        %v1129 = vpop.permute.xlu0 %1128
        %1132 = vset.pattern.permute.xlu0 0
        %1133 = vperm.xlu0 %1132, %v533
        %v1134 = vpop.permute.xlu0 %1133
        %1137 = vset.pattern.permute.xlu0 0
        %1138 = vperm.xlu0 %1137, %v534
        %v1139 = vpop.permute.xlu0 %1138
        %1142 = vset.pattern.permute.xlu0 0
        %1143 = vperm.xlu0 %1142, %v535
        %v1144 = vpop.permute.xlu0 %1143
        %1147 = vset.pattern.permute.xlu0 0
        %1148 = vperm.xlu0 %1147, %v536
        %v1149 = vpop.permute.xlu0 %1148
        %1152 = vset.pattern.permute.xlu0 0
        %1153 = vperm.xlu0 %1152, %v537
        %v1154 = vpop.permute.xlu0 %1153
        %1157 = vset.pattern.permute.xlu0 0
        %1158 = vperm.xlu0 %1157, %v538
        %v1159 = vpop.permute.xlu0 %1158
        %v1161 = vadd.f32 %v1113, %v1124
        %v1162 = vadd.f32 %v1114, %v1129
        %v1163 = vadd.f32 %v1115, %v1134
        %v1164 = vadd.f32 %v1116, %v1139
        %v1165 = vadd.f32 %v1117, %v1144
        %v1166 = vadd.f32 %v1118, %v1149
        %v1167 = vadd.f32 %v1119, %v1154
        %v1168 = vadd.f32 %v1120, %v1159
        %1169 = vrot.lane.b32.xlu0 %v1033, 2
        %v1170 = vpop.permute.xlu0 %1169
        %1171 = vrot.lane.b32.xlu0 %v1034, 2
        %v1172 = vpop.permute.xlu0 %1171
        %1173 = vrot.lane.b32.xlu0 %v1035, 2
        %v1174 = vpop.permute.xlu0 %1173
        %1175 = vrot.lane.b32.xlu0 %v1036, 2
        %v1176 = vpop.permute.xlu0 %1175
        %1177 = vrot.lane.b32.xlu0 %v1037, 2
        %v1178 = vpop.permute.xlu0 %1177
        %1179 = vrot.lane.b32.xlu0 %v1038, 2
        %v1180 = vpop.permute.xlu0 %1179
        %1181 = vrot.lane.b32.xlu0 %v1039, 2
        %v1182 = vpop.permute.xlu0 %1181
        %1183 = vrot.lane.b32.xlu0 %v1040, 2
        %v1184 = vpop.permute.xlu0 %1183
        %1193 = vset.pattern.permute.xlu0 1
        %1194 = vperm.xlu0 %1193, %v503
        %v1195 = vpop.permute.xlu0 %1194
        %1197 = vset.pattern.permute.xlu0 1
        %1198 = vperm.xlu0 %1197, %v504
        %v1199 = vpop.permute.xlu0 %1198
        %1201 = vset.pattern.permute.xlu0 1
        %1202 = vperm.xlu0 %1201, %v505
        %v1203 = vpop.permute.xlu0 %1202
        %1205 = vset.pattern.permute.xlu0 1
        %1206 = vperm.xlu0 %1205, %v506
        %v1207 = vpop.permute.xlu0 %1206
        %1209 = vset.pattern.permute.xlu0 1
        %1210 = vperm.xlu0 %1209, %v507
        %v1211 = vpop.permute.xlu0 %1210
        %1213 = vset.pattern.permute.xlu0 1
        %1214 = vperm.xlu0 %1213, %v508
        %v1215 = vpop.permute.xlu0 %1214
        %1217 = vset.pattern.permute.xlu0 1
        %1218 = vperm.xlu0 %1217, %v509
        %v1219 = vpop.permute.xlu0 %1218
        %1221 = vset.pattern.permute.xlu0 1
        %1222 = vperm.xlu0 %1221, %v510
        %v1223 = vpop.permute.xlu0 %1222
        %v1225 = vmul.f32 %v1195, %v1170
        %v1226 = vmul.f32 %v1199, %v1172
        %v1227 = vmul.f32 %v1203, %v1174
        %v1228 = vmul.f32 %v1207, %v1176
        %v1229 = vmul.f32 %v1211, %v1178
        %v1230 = vmul.f32 %v1215, %v1180
        %v1231 = vmul.f32 %v1219, %v1182
        %v1232 = vmul.f32 %v1223, %v1184
        %v1233 = vadd.f32 %v1161, %v1225
        %v1234 = vadd.f32 %v1162, %v1226
        %v1235 = vadd.f32 %v1163, %v1227
        %v1236 = vadd.f32 %v1164, %v1228
        %v1237 = vadd.f32 %v1165, %v1229
        %v1238 = vadd.f32 %v1166, %v1230
        %v1239 = vadd.f32 %v1167, %v1231
        %v1240 = vadd.f32 %v1168, %v1232
        %1241 = vrot.lane.b32.xlu0 %v1033, 1
        %v1242 = vpop.permute.xlu0 %1241
        %1243 = vrot.lane.b32.xlu0 %v1034, 1
        %v1244 = vpop.permute.xlu0 %1243
        %1245 = vrot.lane.b32.xlu0 %v1035, 1
        %v1246 = vpop.permute.xlu0 %1245
        %1247 = vrot.lane.b32.xlu0 %v1036, 1
        %v1248 = vpop.permute.xlu0 %1247
        %1249 = vrot.lane.b32.xlu0 %v1037, 1
        %v1250 = vpop.permute.xlu0 %1249
        %1251 = vrot.lane.b32.xlu0 %v1038, 1
        %v1252 = vpop.permute.xlu0 %1251
        %1253 = vrot.lane.b32.xlu0 %v1039, 1
        %v1254 = vpop.permute.xlu0 %1253
        %1255 = vrot.lane.b32.xlu0 %v1040, 1
        %v1256 = vpop.permute.xlu0 %1255
        %1265 = vset.pattern.permute.xlu0 2
        %1266 = vperm.xlu0 %1265, %v503
        %v1267 = vpop.permute.xlu0 %1266
        %1269 = vset.pattern.permute.xlu0 2
        %1270 = vperm.xlu0 %1269, %v504
        %v1271 = vpop.permute.xlu0 %1270
        %1273 = vset.pattern.permute.xlu0 2
        %1274 = vperm.xlu0 %1273, %v505
        %v1275 = vpop.permute.xlu0 %1274
        %1277 = vset.pattern.permute.xlu0 2
        %1278 = vperm.xlu0 %1277, %v506
        %v1279 = vpop.permute.xlu0 %1278
        %1281 = vset.pattern.permute.xlu0 2
        %1282 = vperm.xlu0 %1281, %v507
        %v1283 = vpop.permute.xlu0 %1282
        %1285 = vset.pattern.permute.xlu0 2
        %1286 = vperm.xlu0 %1285, %v508
        %v1287 = vpop.permute.xlu0 %1286
        %1289 = vset.pattern.permute.xlu0 2
        %1290 = vperm.xlu0 %1289, %v509
        %v1291 = vpop.permute.xlu0 %1290
        %1293 = vset.pattern.permute.xlu0 2
        %1294 = vperm.xlu0 %1293, %v510
        %v1295 = vpop.permute.xlu0 %1294
        %v1297 = vmul.f32 %v1267, %v1242
        %v1298 = vmul.f32 %v1271, %v1244
        %v1299 = vmul.f32 %v1275, %v1246
        %v1300 = vmul.f32 %v1279, %v1248
        %v1301 = vmul.f32 %v1283, %v1250
        %v1302 = vmul.f32 %v1287, %v1252
        %v1303 = vmul.f32 %v1291, %v1254
        %v1304 = vmul.f32 %v1295, %v1256
        %v1305 = vadd.f32 %v1233, %v1297
        %v1306 = vadd.f32 %v1234, %v1298
        %v1307 = vadd.f32 %v1235, %v1299
        %v1308 = vadd.f32 %v1236, %v1300
        %v1309 = vadd.f32 %v1237, %v1301
        %v1310 = vadd.f32 %v1238, %v1302
        %v1311 = vadd.f32 %v1239, %v1303
        %v1312 = vadd.f32 %v1240, %v1304
        %1313 = vset.pattern.permute.xlu0 3
        %1314 = vperm.xlu0 %1313, %v503
        %v1315 = vpop.permute.xlu0 %1314
        %1317 = vset.pattern.permute.xlu0 3
        %1318 = vperm.xlu0 %1317, %v504
        %v1319 = vpop.permute.xlu0 %1318
        %1321 = vset.pattern.permute.xlu0 3
        %1322 = vperm.xlu0 %1321, %v505
        %v1323 = vpop.permute.xlu0 %1322
        %1325 = vset.pattern.permute.xlu0 3
        %1326 = vperm.xlu0 %1325, %v506
        %v1327 = vpop.permute.xlu0 %1326
        %1329 = vset.pattern.permute.xlu0 3
        %1330 = vperm.xlu0 %1329, %v507
        %v1331 = vpop.permute.xlu0 %1330
        %1333 = vset.pattern.permute.xlu0 3
        %1334 = vperm.xlu0 %1333, %v508
        %v1335 = vpop.permute.xlu0 %1334
        %1337 = vset.pattern.permute.xlu0 3
        %1338 = vperm.xlu0 %1337, %v509
        %v1339 = vpop.permute.xlu0 %1338
        %1341 = vset.pattern.permute.xlu0 3
        %1342 = vperm.xlu0 %1341, %v510
        %v1343 = vpop.permute.xlu0 %1342
        %v1345 = vmul.f32 %v1315, %v1033
        %v1346 = vmul.f32 %v1319, %v1034
        %v1347 = vmul.f32 %v1323, %v1035
        %v1348 = vmul.f32 %v1327, %v1036
        %v1349 = vmul.f32 %v1331, %v1037
        %v1350 = vmul.f32 %v1335, %v1038
        %v1351 = vmul.f32 %v1339, %v1039
        %v1352 = vmul.f32 %v1343, %v1040
        %v1353 = vadd.f32 %v1305, %v1345
        %v1354 = vadd.f32 %v1306, %v1346
        %v1355 = vadd.f32 %v1307, %v1347
        %v1356 = vadd.f32 %v1308, %v1348
        %v1357 = vadd.f32 %v1309, %v1349
        %v1358 = vadd.f32 %v1310, %v1350
        %v1359 = vadd.f32 %v1311, %v1351
        %v1360 = vadd.f32 %v1312, %v1352
        %1361 = vrot.lane.b32.xlu0 %v1033, 127
        %v1362 = vpop.permute.xlu0 %1361
        %1363 = vrot.lane.b32.xlu0 %v1034, 127
        %v1364 = vpop.permute.xlu0 %1363
        %1365 = vrot.lane.b32.xlu0 %v1035, 127
        %v1366 = vpop.permute.xlu0 %1365
        %1367 = vrot.lane.b32.xlu0 %v1036, 127
        %v1368 = vpop.permute.xlu0 %1367
        %1369 = vrot.lane.b32.xlu0 %v1037, 127
        %v1370 = vpop.permute.xlu0 %1369
        %1371 = vrot.lane.b32.xlu0 %v1038, 127
        %v1372 = vpop.permute.xlu0 %1371
        %1373 = vrot.lane.b32.xlu0 %v1039, 127
        %v1374 = vpop.permute.xlu0 %1373
        %1375 = vrot.lane.b32.xlu0 %v1040, 127
        %v1376 = vpop.permute.xlu0 %1375
        %1385 = vset.pattern.permute.xlu0 4
        %1386 = vperm.xlu0 %1385, %v503
        %v1387 = vpop.permute.xlu0 %1386
        %1389 = vset.pattern.permute.xlu0 4
        %1390 = vperm.xlu0 %1389, %v504
        %v1391 = vpop.permute.xlu0 %1390
        %1393 = vset.pattern.permute.xlu0 4
        %1394 = vperm.xlu0 %1393, %v505
        %v1395 = vpop.permute.xlu0 %1394
        %1397 = vset.pattern.permute.xlu0 4
        %1398 = vperm.xlu0 %1397, %v506
        %v1399 = vpop.permute.xlu0 %1398
        %1401 = vset.pattern.permute.xlu0 4
        %1402 = vperm.xlu0 %1401, %v507
        %v1403 = vpop.permute.xlu0 %1402
        %1405 = vset.pattern.permute.xlu0 4
        %1406 = vperm.xlu0 %1405, %v508
        %v1407 = vpop.permute.xlu0 %1406
        %1409 = vset.pattern.permute.xlu0 4
        %1410 = vperm.xlu0 %1409, %v509
        %v1411 = vpop.permute.xlu0 %1410
        %1413 = vset.pattern.permute.xlu0 4
        %1414 = vperm.xlu0 %1413, %v510
        %v1415 = vpop.permute.xlu0 %1414
        %v1417 = vmul.f32 %v1387, %v1362
        %v1418 = vmul.f32 %v1391, %v1364
        %v1419 = vmul.f32 %v1395, %v1366
        %v1420 = vmul.f32 %v1399, %v1368
        %v1421 = vmul.f32 %v1403, %v1370
        %v1422 = vmul.f32 %v1407, %v1372
        %v1423 = vmul.f32 %v1411, %v1374
        %v1424 = vmul.f32 %v1415, %v1376
        %v1425 = vadd.f32 %v1353, %v1417
        %v1426 = vadd.f32 %v1354, %v1418
        %v1427 = vadd.f32 %v1355, %v1419
        %v1428 = vadd.f32 %v1356, %v1420
        %v1429 = vadd.f32 %v1357, %v1421
        %v1430 = vadd.f32 %v1358, %v1422
        %v1431 = vadd.f32 %v1359, %v1423
        %v1432 = vadd.f32 %v1360, %v1424
        %1433 = vrot.lane.b32.xlu0 %v1033, 126
        %v1434 = vpop.permute.xlu0 %1433
        %1435 = vrot.lane.b32.xlu0 %v1034, 126
        %v1436 = vpop.permute.xlu0 %1435
        %1437 = vrot.lane.b32.xlu0 %v1035, 126
        %v1438 = vpop.permute.xlu0 %1437
        %1439 = vrot.lane.b32.xlu0 %v1036, 126
        %v1440 = vpop.permute.xlu0 %1439
        %1441 = vrot.lane.b32.xlu0 %v1037, 126
        %v1442 = vpop.permute.xlu0 %1441
        %1443 = vrot.lane.b32.xlu0 %v1038, 126
        %v1444 = vpop.permute.xlu0 %1443
        %1445 = vrot.lane.b32.xlu0 %v1039, 126
        %v1446 = vpop.permute.xlu0 %1445
        %1447 = vrot.lane.b32.xlu0 %v1040, 126
        %v1448 = vpop.permute.xlu0 %1447
        %1457 = vset.pattern.permute.xlu0 5
        %1458 = vperm.xlu0 %1457, %v503
        %v1459 = vpop.permute.xlu0 %1458
        %1461 = vset.pattern.permute.xlu0 5
        %1462 = vperm.xlu0 %1461, %v504
        %v1463 = vpop.permute.xlu0 %1462
        %1465 = vset.pattern.permute.xlu0 5
        %1466 = vperm.xlu0 %1465, %v505
        %v1467 = vpop.permute.xlu0 %1466
        %1469 = vset.pattern.permute.xlu0 5
        %1470 = vperm.xlu0 %1469, %v506
        %v1471 = vpop.permute.xlu0 %1470
        %1473 = vset.pattern.permute.xlu0 5
        %1474 = vperm.xlu0 %1473, %v507
        %v1475 = vpop.permute.xlu0 %1474
        %1477 = vset.pattern.permute.xlu0 5
        %1478 = vperm.xlu0 %1477, %v508
        %v1479 = vpop.permute.xlu0 %1478
        %1481 = vset.pattern.permute.xlu0 5
        %1482 = vperm.xlu0 %1481, %v509
        %v1483 = vpop.permute.xlu0 %1482
        %1485 = vset.pattern.permute.xlu0 5
        %1486 = vperm.xlu0 %1485, %v510
        %v1487 = vpop.permute.xlu0 %1486
        %v1489 = vmul.f32 %v1459, %v1434
        %v1490 = vmul.f32 %v1463, %v1436
        %v1491 = vmul.f32 %v1467, %v1438
        %v1492 = vmul.f32 %v1471, %v1440
        %v1493 = vmul.f32 %v1475, %v1442
        %v1494 = vmul.f32 %v1479, %v1444
        %v1495 = vmul.f32 %v1483, %v1446
        %v1496 = vmul.f32 %v1487, %v1448
        %v1497 = vadd.f32 %v1425, %v1489
        %v1498 = vadd.f32 %v1426, %v1490
        %v1499 = vadd.f32 %v1427, %v1491
        %v1500 = vadd.f32 %v1428, %v1492
        %v1501 = vadd.f32 %v1429, %v1493
        %v1502 = vadd.f32 %v1430, %v1494
        %v1503 = vadd.f32 %v1431, %v1495
        %v1504 = vadd.f32 %v1432, %v1496
        %1505 = vrot.lane.b32.xlu0 %v1033, 125
        %v1506 = vpop.permute.xlu0 %1505
        %1507 = vrot.lane.b32.xlu0 %v1034, 125
        %v1508 = vpop.permute.xlu0 %1507
        %1509 = vrot.lane.b32.xlu0 %v1035, 125
        %v1510 = vpop.permute.xlu0 %1509
        %1511 = vrot.lane.b32.xlu0 %v1036, 125
        %v1512 = vpop.permute.xlu0 %1511
        %1513 = vrot.lane.b32.xlu0 %v1037, 125
        %v1514 = vpop.permute.xlu0 %1513
        %1515 = vrot.lane.b32.xlu0 %v1038, 125
        %v1516 = vpop.permute.xlu0 %1515
        %1517 = vrot.lane.b32.xlu0 %v1039, 125
        %v1518 = vpop.permute.xlu0 %1517
        %1519 = vrot.lane.b32.xlu0 %v1040, 125
        %v1520 = vpop.permute.xlu0 %1519
        %1529 = vset.pattern.permute.xlu0 6
        %1530 = vperm.xlu0 %1529, %v503
        %v1531 = vpop.permute.xlu0 %1530
        %1533 = vset.pattern.permute.xlu0 6
        %1534 = vperm.xlu0 %1533, %v504
        %v1535 = vpop.permute.xlu0 %1534
        %1537 = vset.pattern.permute.xlu0 6
        %1538 = vperm.xlu0 %1537, %v505
        %v1539 = vpop.permute.xlu0 %1538
        %1541 = vset.pattern.permute.xlu0 6
        %1542 = vperm.xlu0 %1541, %v506
        %v1543 = vpop.permute.xlu0 %1542
        %1545 = vset.pattern.permute.xlu0 6
        %1546 = vperm.xlu0 %1545, %v507
        %v1547 = vpop.permute.xlu0 %1546
        %1549 = vset.pattern.permute.xlu0 6
        %1550 = vperm.xlu0 %1549, %v508
        %v1551 = vpop.permute.xlu0 %1550
        %1553 = vset.pattern.permute.xlu0 6
        %1554 = vperm.xlu0 %1553, %v509
        %v1555 = vpop.permute.xlu0 %1554
        %1557 = vset.pattern.permute.xlu0 6
        %1558 = vperm.xlu0 %1557, %v510
        %v1559 = vpop.permute.xlu0 %1558
        %v1561 = vmul.f32 %v1531, %v1506
        %v1562 = vmul.f32 %v1535, %v1508
        %v1563 = vmul.f32 %v1539, %v1510
        %v1564 = vmul.f32 %v1543, %v1512
        %v1565 = vmul.f32 %v1547, %v1514
        %v1566 = vmul.f32 %v1551, %v1516
        %v1567 = vmul.f32 %v1555, %v1518
        %v1568 = vmul.f32 %v1559, %v1520
        %v1569 = vadd.f32 %v1497, %v1561
        %v1570 = vadd.f32 %v1498, %v1562
        %v1571 = vadd.f32 %v1499, %v1563
        %v1572 = vadd.f32 %v1500, %v1564
        %v1573 = vadd.f32 %v1501, %v1565
        %v1574 = vadd.f32 %v1502, %v1566
        %v1575 = vadd.f32 %v1503, %v1567
        %v1576 = vadd.f32 %v1504, %v1568
        %v1577 = vsub.f32 0.0, %v1573
        %v1578 = vsub.f32 0.0, %v1574
        %v1579 = vsub.f32 0.0, %v1575
        %v1580 = vsub.f32 0.0, %v1576
        %v1581 = vmul.f32 %v1577, 1.442695
        %v1582 = vpow.pop %v1581
        %v1583 = vmul.f32 %v1578, 1.442695
        %v1584 = vpow.pop %v1583
        %v1585 = vmul.f32 %v1579, 1.442695
        %v1586 = vpow.pop %v1585
        %v1587 = vmul.f32 %v1580, 1.442695
        %v1588 = vpow.pop %v1587
        %v1589 = vadd.f32 %v1582, 1.0
        %v1590 = vadd.f32 %v1584, 1.0
        %v1591 = vadd.f32 %v1586, 1.0
        %v1592 = vadd.f32 %v1588, 1.0
        %v1593 = vrcp.pop %v1589
        %v1594 = vmul.f32 1.0, %v1593
        %v1595 = vrcp.pop %v1590
        %v1596 = vmul.f32 1.0, %v1595
        %v1597 = vrcp.pop %v1591
        %v1598 = vmul.f32 1.0, %v1597
        %v1599 = vrcp.pop %v1592
        %v1600 = vmul.f32 1.0, %v1599
        %v1601 = vmul.f32 %v1569, %v1594
        %v1602 = vmul.f32 %v1570, %v1596
        %v1603 = vmul.f32 %v1571, %v1598
        %v1604 = vmul.f32 %v1572, %v1600
        %v1605 = vpack.c.bf16 %v1602, %v1601
        %v1606 = vpack.c.bf16 %v1604, %v1603
        %1608 = vset.pattern.permute.xlu0 0
        %1609 = vperm.xlu0 %1608, %v539
        %v1610 = vpop.permute.xlu0 %1609
        %1613 = vset.pattern.permute.xlu0 0
        %1614 = vperm.xlu0 %1613, %v540
        %v1615 = vpop.permute.xlu0 %1614
        %1618 = vset.pattern.permute.xlu0 0
        %1619 = vperm.xlu0 %1618, %v541
        %v1620 = vpop.permute.xlu0 %1619
        %1623 = vset.pattern.permute.xlu0 0
        %1624 = vperm.xlu0 %1623, %v542
        %v1625 = vpop.permute.xlu0 %1624
        %v1631 = vunpack.c.l.b16 %v511
        %v1632 = vunpack.c.l.b16 %v512
        %v1633 = vunpack.c.l.b16 %v513
        %v1634 = vunpack.c.l.b16 %v514
        %v1635 = vpack.c.b16 %v1632, %v1631
        %v1636 = vpack.c.b16 %v1634, %v1633
        %v1638 = vsel %vm753, %v1635, 0
        %v1641 = vsel %vm753, %v1636, 0
        %1643 = vmatprep.subr.bf16.mxu0 0
        %1644 = vmatpush1.bf16.msra.mxu0 %v1605
        %1645 = vmatprep.subr.bf16.mxu0 0
        %1646 = vmatpush1.bf16.msra.mxu0 %v1606
        %1647 = vmatprep.subr.bf16.mxu0 0
        %1648 = vmatpush1.bf16.msra.mxu0 0
        %1649 = vmatprep.subr.bf16.mxu0 0
        %1650 = vmatpush1.bf16.msra.mxu0 0
        %1651 = vmatprep.subr.bf16.mxu0 0
        %1652 = vmatpush1.bf16.msra.mxu0 0
        %1653 = vmatprep.subr.bf16.mxu0 0
        %1654 = vmatpush1.bf16.msra.mxu0 0
        %1655 = vmatprep.subr.bf16.mxu0 0
        %1656 = vmatpush1.bf16.msra.mxu0 0
        %1657 = vmatprep.subr.bf16.mxu0 0
        %1658 = vmatpush1.bf16.msra.mxu0 0
        %1659 = vmatprep.subr.bf16.mxu0 0
        %1660 = vmatpush1.bf16.msra.mxu0 0
        %1661 = vmatprep.subr.bf16.mxu0 0
        %1662 = vmatpush1.bf16.msra.mxu0 0
        %1663 = vmatprep.subr.bf16.mxu0 0
        %1664 = vmatpush1.bf16.msra.mxu0 0
        %1665 = vmatprep.subr.bf16.mxu0 0
        %1666 = vmatpush1.bf16.msra.mxu0 0
        %1667 = vmatprep.subr.bf16.mxu0 0
        %1668 = vmatpush1.bf16.msra.mxu0 0
        %1669 = vmatprep.subr.bf16.mxu0 0
        %1670 = vmatpush1.bf16.msra.mxu0 0
        %1671 = vmatprep.subr.bf16.mxu0 0
        %1672 = vmatpush1.bf16.msra.mxu0 0
        %1673 = vmatprep.subr.bf16.mxu0 0
        %1674 = vmatpush1.bf16.msra.mxu0 0
        %1675 = vmatprep.mubr.bf16.mxu0 0
        %1676 = vmatmul.mubr.bf16.gmra.mrb[0].mxu0 %v1638
        %v1677 = vpop.f32.mrb[0].mxu0
        %v1678 = vadd.f32 %v1610, %v1677
        %v1679 = vpop.f32.mrb[0].mxu0
        %v1680 = vpop.f32.mrb[0].mxu0
        %v1681 = vadd.f32 %v1615, %v1680
        %v1682 = vpop.f32.mrb[0].mxu0
        %1683 = vmatprep.mubr.bf16.mxu0 0
        %1684 = vmatmul.mubr.bf16.gmra.mrb[0].mxu0 %v1641
        %v1685 = vpop.f32.mrb[0].mxu0
        %v1686 = vadd.f32 %v1620, %v1685
        %v1687 = vpop.f32.mrb[0].mxu0
        %v1688 = vpop.f32.mrb[0].mxu0
        %v1689 = vadd.f32 %v1625, %v1688
        %v1690 = vpop.f32.mrb[0].mxu0
        %1691 = vdwg.mxu0
        %v1692 = vadd.f32 %v464, %v1678
        %v1693 = vadd.f32 %v465, %v1681
        %v1694 = vadd.f32 %v466, %v1686
        %v1695 = vadd.f32 %v467, %v1689
        %v1696 = vld [vmem:[%s8] sm:$0xf]
        %v1697 = vld [vmem:[%s8 + $0x4] sm:$0xf]
        %v1698 = vld [vmem:[%s8 + $0x8] sm:$0xf]
        %v1699 = vld [vmem:[%s8 + $0xc] sm:$0xf]
        %v1700 = vld [vmem:[%s8 + $0x10] sm:$0xf]
        %v1701 = vld [vmem:[%s8 + $0x14] sm:$0xf]
        %v1702 = vld [vmem:[%s8 + $0x18] sm:$0xf]
        %v1703 = vld [vmem:[%s8 + $0x1c] sm:$0xf]
        %v1704 = vld [vmem:[%s8 + $0x20] sm:$0xf]
        %v1705 = vld [vmem:[%s8 + $0x24] sm:$0xf]
        %v1706 = vld [vmem:[%s8 + $0x28] sm:$0xf]
        %v1707 = vld [vmem:[%s8 + $0x2c] sm:$0xf]
        %v1708 = vld [vmem:[%s8 + $0x30] sm:$0xf]
        %v1709 = vld [vmem:[%s8 + $0x34] sm:$0xf]
        %v1710 = vld [vmem:[%s8 + $0x38] sm:$0xf]
        %v1711 = vld [vmem:[%s8 + $0x3c] sm:$0xf]
        %v1712 = vld [vmem:[%s9] sm:$0xf]
        %v1713 = vld [vmem:[%s9 + $0x4] sm:$0xf]
        %v1714 = vld [vmem:[%s9 + $0x8] sm:$0xf]
        %v1715 = vld [vmem:[%s9 + $0xc] sm:$0xf]
        %v1716 = vld [vmem:[%s9 + $0x10] sm:$0xf]
        %v1717 = vld [vmem:[%s9 + $0x14] sm:$0xf]
        %v1718 = vld [vmem:[%s9 + $0x18] sm:$0xf]
        %v1719 = vld [vmem:[%s9 + $0x1c] sm:$0xf]
        %v1720 = vld [vmem:[%s9 + $0x20] sm:$0xf]
        %v1721 = vld [vmem:[%s9 + $0x24] sm:$0xf]
        %v1722 = vld [vmem:[%s9 + $0x28] sm:$0xf]
        %v1723 = vld [vmem:[%s9 + $0x2c] sm:$0xf]
        %v1724 = vld [vmem:[%s9 + $0x30] sm:$0xf]
        %v1725 = vld [vmem:[%s9 + $0x34] sm:$0xf]
        %v1726 = vld [vmem:[%s9 + $0x38] sm:$0xf]
        %v1727 = vld [vmem:[%s9 + $0x3c] sm:$0xf]
        %v1728 = vld [vmem:[%s10] sm:$0xff]
        %v1729 = vld [vmem:[%s10 + $0x8] sm:$0xff]
        %v1730 = vld [vmem:[%s10 + $0x10] sm:$0xff]
        %v1731 = vld [vmem:[%s10 + $0x18] sm:$0xff]
        %v1732 = vld [vmem:[%s10 + $0x20] sm:$0xff]
        %v1733 = vld [vmem:[%s10 + $0x28] sm:$0xff]
        %v1734 = vld [vmem:[%s10 + $0x30] sm:$0xff]
        %v1735 = vld [vmem:[%s10 + $0x38] sm:$0xff]
        %v1736 = vld [vmem:[%s11] sm:$0xf]
        %v1737 = vld [vmem:[%s11 + $0x4] sm:$0xf]
        %v1738 = vld [vmem:[%s11 + $0x8] sm:$0xf]
        %v1739 = vld [vmem:[%s11 + $0xc] sm:$0xf]
        %v1740 = vld [vmem:[%s12] sm:$0xff]
        %v1741 = vld [vmem:[%s12 + $0x8] sm:$0xff]
        %v1742 = vld [vmem:[%s12 + $0x10] sm:$0xff]
        %v1743 = vld [vmem:[%s12 + $0x18] sm:$0xff]
        %v1744 = vld [vmem:[%s12 + $0x20] sm:$0xff]
        %v1745 = vld [vmem:[%s12 + $0x28] sm:$0xff]
        %v1746 = vld [vmem:[%s12 + $0x30] sm:$0xff]
        %v1747 = vld [vmem:[%s12 + $0x38] sm:$0xff]
        %v1748 = vld [vmem:[%s12 + $0x40] sm:$0xff]
        %v1749 = vld [vmem:[%s12 + $0x48] sm:$0xff]
        %v1750 = vld [vmem:[%s12 + $0x50] sm:$0xff]
        %v1751 = vld [vmem:[%s12 + $0x58] sm:$0xff]
        %v1752 = vld [vmem:[%s12 + $0x60] sm:$0xff]
        %v1753 = vld [vmem:[%s12 + $0x68] sm:$0xff]
        %v1754 = vld [vmem:[%s12 + $0x70] sm:$0xff]
        %v1755 = vld [vmem:[%s12 + $0x78] sm:$0xff]
        %v1756 = vld [vmem:[%s12 + $0x80] sm:$0xff]
        %v1757 = vld [vmem:[%s12 + $0x88] sm:$0xff]
        %v1758 = vld [vmem:[%s12 + $0x90] sm:$0xff]
        %v1759 = vld [vmem:[%s12 + $0x98] sm:$0xff]
        %v1760 = vld [vmem:[%s12 + $0xa0] sm:$0xff]
        %v1761 = vld [vmem:[%s12 + $0xa8] sm:$0xff]
        %v1762 = vld [vmem:[%s12 + $0xb0] sm:$0xff]
        %v1763 = vld [vmem:[%s12 + $0xb8] sm:$0xff]
        %v1764 = vld [vmem:[%s12 + $0xc0] sm:$0xff]
        %v1765 = vld [vmem:[%s12 + $0xc8] sm:$0xff]
        %v1766 = vld [vmem:[%s12 + $0xd0] sm:$0xff]
        %v1767 = vld [vmem:[%s12 + $0xd8] sm:$0xff]
        %v1768 = vpack.c.bf16 %v1693, %v1692
        %v1769 = vpack.c.bf16 %v1695, %v1694
        %v1786 = vunpack.c.l.b16 %v1712
        %v1787 = vunpack.c.l.b16 %v1713
        %v1788 = vunpack.c.l.b16 %v1714
        %v1789 = vunpack.c.l.b16 %v1715
        %v1790 = vunpack.c.l.b16 %v1716
        %v1791 = vunpack.c.l.b16 %v1717
        %v1792 = vunpack.c.l.b16 %v1718
        %v1793 = vunpack.c.l.b16 %v1719
        %v1794 = vunpack.c.l.b16 %v1720
        %v1795 = vunpack.c.l.b16 %v1721
        %v1796 = vunpack.c.l.b16 %v1722
        %v1797 = vunpack.c.l.b16 %v1723
        %v1798 = vunpack.c.l.b16 %v1724
        %v1799 = vunpack.c.l.b16 %v1725
        %v1800 = vunpack.c.l.b16 %v1726
        %v1801 = vunpack.c.l.b16 %v1727
        %v1802 = vpack.c.b16 %v1787, %v1786
        %v1803 = vpack.c.b16 %v1789, %v1788
        %v1804 = vpack.c.b16 %v1791, %v1790
        %v1805 = vpack.c.b16 %v1793, %v1792
        %v1806 = vpack.c.b16 %v1795, %v1794
        %v1807 = vpack.c.b16 %v1797, %v1796
        %v1808 = vpack.c.b16 %v1799, %v1798
        %v1809 = vpack.c.b16 %v1801, %v1800
        %v1811 = vsel %vm591, %v1802, 0
        %v1814 = vsel %vm591, %v1803, 0
        %v1817 = vsel %vm591, %v1804, 0
        %v1820 = vsel %vm591, %v1805, 0
        %v1823 = vsel %vm591, %v1806, 0
        %v1826 = vsel %vm591, %v1807, 0
        %v1829 = vsel %vm591, %v1808, 0
        %v1832 = vsel %vm591, %v1809, 0
        %1834 = vmatprep.subr.bf16.mxu0 0
        %1835 = vmatpush1.bf16.msra.mxu0 %v589
        %1836 = vmatprep.subr.bf16.mxu0 0
        %1837 = vmatpush1.bf16.msra.mxu0 0
        %1838 = vmatprep.subr.bf16.mxu0 0
        %1839 = vmatpush1.bf16.msra.mxu0 0
        %1840 = vmatprep.subr.bf16.mxu0 0
        %1841 = vmatpush1.bf16.msra.mxu0 0
        %1842 = vmatprep.subr.bf16.mxu0 0
        %1843 = vmatpush1.bf16.msra.mxu0 0
        %1844 = vmatprep.subr.bf16.mxu0 0
        %1845 = vmatpush1.bf16.msra.mxu0 0
        %1846 = vmatprep.subr.bf16.mxu0 0
        %1847 = vmatpush1.bf16.msra.mxu0 0
        %1848 = vmatprep.subr.bf16.mxu0 0
        %1849 = vmatpush1.bf16.msra.mxu0 0
        %1850 = vmatprep.subr.bf16.mxu0 0
        %1851 = vmatpush1.bf16.msra.mxu0 0
        %1852 = vmatprep.subr.bf16.mxu0 0
        %1853 = vmatpush1.bf16.msra.mxu0 0
        %1854 = vmatprep.subr.bf16.mxu0 0
        %1855 = vmatpush1.bf16.msra.mxu0 0
        %1856 = vmatprep.subr.bf16.mxu0 0
        %1857 = vmatpush1.bf16.msra.mxu0 0
        %1858 = vmatprep.subr.bf16.mxu0 0
        %1859 = vmatpush1.bf16.msra.mxu0 0
        %1860 = vmatprep.subr.bf16.mxu0 0
        %1861 = vmatpush1.bf16.msra.mxu0 0
        %1862 = vmatprep.subr.bf16.mxu0 0
        %1863 = vmatpush1.bf16.msra.mxu0 0
        %1864 = vmatprep.subr.bf16.mxu0 0
        %1865 = vmatpush1.bf16.msra.mxu0 0
        %1866 = vmatprep.mubr.bf16.mxu0 0
        %1867 = vmatmul.mubr.bf16.gmra.mrb[0].mxu0 %v1811
        %v1868 = vpop.f32.mrb[0].mxu0
        %v1869 = vadd.f32 0.0, %v1868
        %v1870 = vpop.f32.mrb[0].mxu0
        %v1871 = vpop.f32.mrb[0].mxu0
        %v1872 = vadd.f32 0.0, %v1871
        %v1873 = vpop.f32.mrb[0].mxu0
        %1874 = vmatprep.mubr.bf16.mxu0 0
        %1875 = vmatmul.mubr.bf16.gmra.mrb[0].mxu0 %v1814
        %v1876 = vpop.f32.mrb[0].mxu0
        %v1877 = vadd.f32 0.0, %v1876
        %v1878 = vpop.f32.mrb[0].mxu0
        %v1879 = vpop.f32.mrb[0].mxu0
        %v1880 = vadd.f32 0.0, %v1879
        %v1881 = vpop.f32.mrb[0].mxu0
        %1882 = vmatprep.mubr.bf16.mxu0 0
        %1883 = vmatmul.mubr.bf16.gmra.mrb[0].mxu0 %v1817
        %v1884 = vpop.f32.mrb[0].mxu0
        %v1885 = vadd.f32 0.0, %v1884
        %v1886 = vpop.f32.mrb[0].mxu0
        %v1887 = vpop.f32.mrb[0].mxu0
        %v1888 = vadd.f32 0.0, %v1887
        %v1889 = vpop.f32.mrb[0].mxu0
        %1890 = vmatprep.mubr.bf16.mxu0 0
        %1891 = vmatmul.mubr.bf16.gmra.mrb[0].mxu0 %v1820
        %v1892 = vpop.f32.mrb[0].mxu0
        %v1893 = vadd.f32 0.0, %v1892
        %v1894 = vpop.f32.mrb[0].mxu0
        %v1895 = vpop.f32.mrb[0].mxu0
        %v1896 = vadd.f32 0.0, %v1895
        %v1897 = vpop.f32.mrb[0].mxu0
        %1898 = vmatprep.mubr.bf16.mxu0 0
        %1899 = vmatmul.mubr.bf16.gmra.mrb[0].mxu0 %v1823
        %v1900 = vpop.f32.mrb[0].mxu0
        %v1901 = vadd.f32 0.0, %v1900
        %v1902 = vpop.f32.mrb[0].mxu0
        %v1903 = vpop.f32.mrb[0].mxu0
        %v1904 = vadd.f32 0.0, %v1903
        %v1905 = vpop.f32.mrb[0].mxu0
        %1906 = vmatprep.mubr.bf16.mxu0 0
        %1907 = vmatmul.mubr.bf16.gmra.mrb[0].mxu0 %v1826
        %v1908 = vpop.f32.mrb[0].mxu0
        %v1909 = vadd.f32 0.0, %v1908
        %v1910 = vpop.f32.mrb[0].mxu0
        %v1911 = vpop.f32.mrb[0].mxu0
        %v1912 = vadd.f32 0.0, %v1911
        %v1913 = vpop.f32.mrb[0].mxu0
        %1914 = vmatprep.mubr.bf16.mxu0 0
        %1915 = vmatmul.mubr.bf16.gmra.mrb[0].mxu0 %v1829
        %v1916 = vpop.f32.mrb[0].mxu0
        %v1917 = vadd.f32 0.0, %v1916
        %v1918 = vpop.f32.mrb[0].mxu0
        %v1919 = vpop.f32.mrb[0].mxu0
        %v1920 = vadd.f32 0.0, %v1919
        %v1921 = vpop.f32.mrb[0].mxu0
        %1922 = vmatprep.mubr.bf16.mxu0 0
        %1923 = vmatmul.mubr.bf16.gmra.mrb[0].mxu0 %v1832
        %v1924 = vpop.f32.mrb[0].mxu0
        %v1925 = vadd.f32 0.0, %v1924
        %v1926 = vpop.f32.mrb[0].mxu0
        %v1927 = vpop.f32.mrb[0].mxu0
        %v1928 = vadd.f32 0.0, %v1927
        %v1929 = vpop.f32.mrb[0].mxu0
        %1930 = vdwg.mxu0
        %v1947 = vunpack.c.l.b16 %v1696
        %v1948 = vunpack.c.l.b16 %v1697
        %v1949 = vunpack.c.l.b16 %v1698
        %v1950 = vunpack.c.l.b16 %v1699
        %v1951 = vunpack.c.l.b16 %v1700
        %v1952 = vunpack.c.l.b16 %v1701
        %v1953 = vunpack.c.l.b16 %v1702
        %v1954 = vunpack.c.l.b16 %v1703
        %v1955 = vunpack.c.l.b16 %v1704
        %v1956 = vunpack.c.l.b16 %v1705
        %v1957 = vunpack.c.l.b16 %v1706
        %v1958 = vunpack.c.l.b16 %v1707
        %v1959 = vunpack.c.l.b16 %v1708
        %v1960 = vunpack.c.l.b16 %v1709
        %v1961 = vunpack.c.l.b16 %v1710
        %v1962 = vunpack.c.l.b16 %v1711
        %v1963 = vpack.c.b16 %v1948, %v1947
        %v1964 = vpack.c.b16 %v1950, %v1949
        %v1965 = vpack.c.b16 %v1952, %v1951
        %v1966 = vpack.c.b16 %v1954, %v1953
        %v1967 = vpack.c.b16 %v1956, %v1955
        %v1968 = vpack.c.b16 %v1958, %v1957
        %v1969 = vpack.c.b16 %v1960, %v1959
        %v1970 = vpack.c.b16 %v1962, %v1961
        %v1972 = vsel %vm753, %v1963, 0
        %v1975 = vsel %vm753, %v1964, 0
        %v1978 = vsel %vm753, %v1965, 0
        %v1981 = vsel %vm753, %v1966, 0
        %v1984 = vsel %vm753, %v1967, 0
        %v1987 = vsel %vm753, %v1968, 0
        %v1990 = vsel %vm753, %v1969, 0
        %v1993 = vsel %vm753, %v1970, 0
        %1995 = vmatprep.subr.bf16.mxu0 0
        %1996 = vmatpush1.bf16.msra.mxu0 %v1768
        %1997 = vmatprep.subr.bf16.mxu0 0
        %1998 = vmatpush1.bf16.msra.mxu0 %v1769
        %1999 = vmatprep.subr.bf16.mxu0 0
        %2000 = vmatpush1.bf16.msra.mxu0 0
        %2001 = vmatprep.subr.bf16.mxu0 0
        %2002 = vmatpush1.bf16.msra.mxu0 0
        %2003 = vmatprep.subr.bf16.mxu0 0
        %2004 = vmatpush1.bf16.msra.mxu0 0
        %2005 = vmatprep.subr.bf16.mxu0 0
        %2006 = vmatpush1.bf16.msra.mxu0 0
        %2007 = vmatprep.subr.bf16.mxu0 0
        %2008 = vmatpush1.bf16.msra.mxu0 0
        %2009 = vmatprep.subr.bf16.mxu0 0
        %2010 = vmatpush1.bf16.msra.mxu0 0
        %2011 = vmatprep.subr.bf16.mxu0 0
        %2012 = vmatpush1.bf16.msra.mxu0 0
        %2013 = vmatprep.subr.bf16.mxu0 0
        %2014 = vmatpush1.bf16.msra.mxu0 0
        %2015 = vmatprep.subr.bf16.mxu0 0
        %2016 = vmatpush1.bf16.msra.mxu0 0
        %2017 = vmatprep.subr.bf16.mxu0 0
        %2018 = vmatpush1.bf16.msra.mxu0 0
        %2019 = vmatprep.subr.bf16.mxu0 0
        %2020 = vmatpush1.bf16.msra.mxu0 0
        %2021 = vmatprep.subr.bf16.mxu0 0
        %2022 = vmatpush1.bf16.msra.mxu0 0
        %2023 = vmatprep.subr.bf16.mxu0 0
        %2024 = vmatpush1.bf16.msra.mxu0 0
        %2025 = vmatprep.subr.bf16.mxu0 0
        %2026 = vmatpush1.bf16.msra.mxu0 0
        %2027 = vmatprep.mubr.bf16.mxu0 0
        %2028 = vmatmul.mubr.bf16.gmra.mrb[0].mxu0 %v1972
        %v2029 = vpop.f32.mrb[0].mxu0
        %v2030 = vadd.f32 %v1869, %v2029
        %v2031 = vpop.f32.mrb[0].mxu0
        %v2032 = vpop.f32.mrb[0].mxu0
        %v2033 = vadd.f32 %v1872, %v2032
        %v2034 = vpop.f32.mrb[0].mxu0
        %2035 = vmatprep.mubr.bf16.mxu0 0
        %2036 = vmatmul.mubr.bf16.gmra.mrb[0].mxu0 %v1975
        %v2037 = vpop.f32.mrb[0].mxu0
        %v2038 = vadd.f32 %v1877, %v2037
        %v2039 = vpop.f32.mrb[0].mxu0
        %v2040 = vpop.f32.mrb[0].mxu0
        %v2041 = vadd.f32 %v1880, %v2040
        %v2042 = vpop.f32.mrb[0].mxu0
        %2043 = vmatprep.mubr.bf16.mxu0 0
        %2044 = vmatmul.mubr.bf16.gmra.mrb[0].mxu0 %v1978
        %v2045 = vpop.f32.mrb[0].mxu0
        %v2046 = vadd.f32 %v1885, %v2045
        %v2047 = vpop.f32.mrb[0].mxu0
        %v2048 = vpop.f32.mrb[0].mxu0
        %v2049 = vadd.f32 %v1888, %v2048
        %v2050 = vpop.f32.mrb[0].mxu0
        %2051 = vmatprep.mubr.bf16.mxu0 0
        %2052 = vmatmul.mubr.bf16.gmra.mrb[0].mxu0 %v1981
        %v2053 = vpop.f32.mrb[0].mxu0
        %v2054 = vadd.f32 %v1893, %v2053
        %v2055 = vpop.f32.mrb[0].mxu0
        %v2056 = vpop.f32.mrb[0].mxu0
        %v2057 = vadd.f32 %v1896, %v2056
        %v2058 = vpop.f32.mrb[0].mxu0
        %2059 = vmatprep.mubr.bf16.mxu0 0
        %2060 = vmatmul.mubr.bf16.gmra.mrb[0].mxu0 %v1984
        %v2061 = vpop.f32.mrb[0].mxu0
        %v2062 = vadd.f32 %v1901, %v2061
        %v2063 = vpop.f32.mrb[0].mxu0
        %v2064 = vpop.f32.mrb[0].mxu0
        %v2065 = vadd.f32 %v1904, %v2064
        %v2066 = vpop.f32.mrb[0].mxu0
        %2067 = vmatprep.mubr.bf16.mxu0 0
        %2068 = vmatmul.mubr.bf16.gmra.mrb[0].mxu0 %v1987
        %v2069 = vpop.f32.mrb[0].mxu0
        %v2070 = vadd.f32 %v1909, %v2069
        %v2071 = vpop.f32.mrb[0].mxu0
        %v2072 = vpop.f32.mrb[0].mxu0
        %v2073 = vadd.f32 %v1912, %v2072
        %v2074 = vpop.f32.mrb[0].mxu0
        %2075 = vmatprep.mubr.bf16.mxu0 0
        %2076 = vmatmul.mubr.bf16.gmra.mrb[0].mxu0 %v1990
        %v2077 = vpop.f32.mrb[0].mxu0
        %v2078 = vadd.f32 %v1917, %v2077
        %v2079 = vpop.f32.mrb[0].mxu0
        %v2080 = vpop.f32.mrb[0].mxu0
        %v2081 = vadd.f32 %v1920, %v2080
        %v2082 = vpop.f32.mrb[0].mxu0
        %2083 = vmatprep.mubr.bf16.mxu0 0
        %2084 = vmatmul.mubr.bf16.gmra.mrb[0].mxu0 %v1993
        %v2085 = vpop.f32.mrb[0].mxu0
        %v2086 = vadd.f32 %v1925, %v2085
        %v2087 = vpop.f32.mrb[0].mxu0
        %v2088 = vpop.f32.mrb[0].mxu0
        %v2089 = vadd.f32 %v1928, %v2088
        %v2090 = vpop.f32.mrb[0].mxu0
        %2091 = vdwg.mxu0
        %2093 = vset.pattern.permute.xlu0 0
        %2094 = vperm.xlu0 %2093, %v1740
        %v2095 = vpop.permute.xlu0 %2094
        %2098 = vset.pattern.permute.xlu0 0
        %2099 = vperm.xlu0 %2098, %v1741
        %v2100 = vpop.permute.xlu0 %2099
        %2103 = vset.pattern.permute.xlu0 0
        %2104 = vperm.xlu0 %2103, %v1742
        %v2105 = vpop.permute.xlu0 %2104
        %2108 = vset.pattern.permute.xlu0 0
        %2109 = vperm.xlu0 %2108, %v1743
        %v2110 = vpop.permute.xlu0 %2109
        %2113 = vset.pattern.permute.xlu0 0
        %2114 = vperm.xlu0 %2113, %v1744
        %v2115 = vpop.permute.xlu0 %2114
        %2118 = vset.pattern.permute.xlu0 0
        %2119 = vperm.xlu0 %2118, %v1745
        %v2120 = vpop.permute.xlu0 %2119
        %2123 = vset.pattern.permute.xlu0 0
        %2124 = vperm.xlu0 %2123, %v1746
        %v2125 = vpop.permute.xlu0 %2124
        %2128 = vset.pattern.permute.xlu0 0
        %2129 = vperm.xlu0 %2128, %v1747
        %v2130 = vpop.permute.xlu0 %2129
        %2133 = vset.pattern.permute.xlu0 0
        %2134 = vperm.xlu0 %2133, %v1748
        %v2135 = vpop.permute.xlu0 %2134
        %2138 = vset.pattern.permute.xlu0 0
        %2139 = vperm.xlu0 %2138, %v1749
        %v2140 = vpop.permute.xlu0 %2139
        %2143 = vset.pattern.permute.xlu0 0
        %2144 = vperm.xlu0 %2143, %v1750
        %v2145 = vpop.permute.xlu0 %2144
        %2148 = vset.pattern.permute.xlu0 0
        %2149 = vperm.xlu0 %2148, %v1751
        %v2150 = vpop.permute.xlu0 %2149
        %2153 = vset.pattern.permute.xlu0 0
        %2154 = vperm.xlu0 %2153, %v1752
        %v2155 = vpop.permute.xlu0 %2154
        %2158 = vset.pattern.permute.xlu0 0
        %2159 = vperm.xlu0 %2158, %v1753
        %v2160 = vpop.permute.xlu0 %2159
        %2163 = vset.pattern.permute.xlu0 0
        %2164 = vperm.xlu0 %2163, %v1754
        %v2165 = vpop.permute.xlu0 %2164
        %2168 = vset.pattern.permute.xlu0 0
        %2169 = vperm.xlu0 %2168, %v1755
        %v2170 = vpop.permute.xlu0 %2169
        %v2172 = vadd.f32 %v2030, %v2095
        %v2173 = vadd.f32 %v2033, %v2100
        %v2174 = vadd.f32 %v2038, %v2105
        %v2175 = vadd.f32 %v2041, %v2110
        %v2176 = vadd.f32 %v2046, %v2115
        %v2177 = vadd.f32 %v2049, %v2120
        %v2178 = vadd.f32 %v2054, %v2125
        %v2179 = vadd.f32 %v2057, %v2130
        %v2180 = vadd.f32 %v2062, %v2135
        %v2181 = vadd.f32 %v2065, %v2140
        %v2182 = vadd.f32 %v2070, %v2145
        %v2183 = vadd.f32 %v2073, %v2150
        %v2184 = vadd.f32 %v2078, %v2155
        %v2185 = vadd.f32 %v2081, %v2160
        %v2186 = vadd.f32 %v2086, %v2165
        %v2187 = vadd.f32 %v2089, %v2170
        %v2188 = vsub.f32 0.0, %v2180
        %v2189 = vsub.f32 0.0, %v2181
        %v2190 = vsub.f32 0.0, %v2182
        %v2191 = vsub.f32 0.0, %v2183
        %v2192 = vsub.f32 0.0, %v2184
        %v2193 = vsub.f32 0.0, %v2185
        %v2194 = vsub.f32 0.0, %v2186
        %v2195 = vsub.f32 0.0, %v2187
        %v2196 = vmul.f32 %v2188, 1.442695
        %v2197 = vpow.pop %v2196
        %v2198 = vmul.f32 %v2189, 1.442695
        %v2199 = vpow.pop %v2198
        %v2200 = vmul.f32 %v2190, 1.442695
        %v2201 = vpow.pop %v2200
        %v2202 = vmul.f32 %v2191, 1.442695
        %v2203 = vpow.pop %v2202
        %v2204 = vmul.f32 %v2192, 1.442695
        %v2205 = vpow.pop %v2204
        %v2206 = vmul.f32 %v2193, 1.442695
        %v2207 = vpow.pop %v2206
        %v2208 = vmul.f32 %v2194, 1.442695
        %v2209 = vpow.pop %v2208
        %v2210 = vmul.f32 %v2195, 1.442695
        %v2211 = vpow.pop %v2210
        %v2212 = vadd.f32 %v2197, 1.0
        %v2213 = vadd.f32 %v2199, 1.0
        %v2214 = vadd.f32 %v2201, 1.0
        %v2215 = vadd.f32 %v2203, 1.0
        %v2216 = vadd.f32 %v2205, 1.0
        %v2217 = vadd.f32 %v2207, 1.0
        %v2218 = vadd.f32 %v2209, 1.0
        %v2219 = vadd.f32 %v2211, 1.0
        %v2220 = vrcp.pop %v2212
        %v2221 = vmul.f32 1.0, %v2220
        %v2222 = vrcp.pop %v2213
        %v2223 = vmul.f32 1.0, %v2222
        %v2224 = vrcp.pop %v2214
        %v2225 = vmul.f32 1.0, %v2224
        %v2226 = vrcp.pop %v2215
        %v2227 = vmul.f32 1.0, %v2226
        %v2228 = vrcp.pop %v2216
        %v2229 = vmul.f32 1.0, %v2228
        %v2230 = vrcp.pop %v2217
        %v2231 = vmul.f32 1.0, %v2230
        %v2232 = vrcp.pop %v2218
        %v2233 = vmul.f32 1.0, %v2232
        %v2234 = vrcp.pop %v2219
        %v2235 = vmul.f32 1.0, %v2234
        %v2236 = vmul.f32 %v2172, %v2221
        %v2237 = vmul.f32 %v2173, %v2223
        %v2238 = vmul.f32 %v2174, %v2225
        %v2239 = vmul.f32 %v2175, %v2227
        %v2240 = vmul.f32 %v2176, %v2229
        %v2241 = vmul.f32 %v2177, %v2231
        %v2242 = vmul.f32 %v2178, %v2233
        %v2243 = vmul.f32 %v2179, %v2235
        %v2244 = vmul.f32 %v2236, %v1031
        %v2245 = vmul.f32 %v2237, %v1031
        %v2246 = vmul.f32 %v2238, %v1031
        %v2247 = vmul.f32 %v2239, %v1031
        %v2248 = vmul.f32 %v2240, %v1031
        %v2249 = vmul.f32 %v2241, %v1031
        %v2250 = vmul.f32 %v2242, %v1031
        %v2251 = vmul.f32 %v2243, %v1031
        %2260 = vrot.lane.b32.xlu0 %v2244, 3
        %v2261 = vpop.permute.xlu0 %2260
        %2262 = vrot.lane.b32.xlu0 %v2245, 3
        %v2263 = vpop.permute.xlu0 %2262
        %2264 = vrot.lane.b32.xlu0 %v2246, 3
        %v2265 = vpop.permute.xlu0 %2264
        %2266 = vrot.lane.b32.xlu0 %v2247, 3
        %v2267 = vpop.permute.xlu0 %2266
        %2268 = vrot.lane.b32.xlu0 %v2248, 3
        %v2269 = vpop.permute.xlu0 %2268
        %2270 = vrot.lane.b32.xlu0 %v2249, 3
        %v2271 = vpop.permute.xlu0 %2270
        %2272 = vrot.lane.b32.xlu0 %v2250, 3
        %v2273 = vpop.permute.xlu0 %2272
        %2274 = vrot.lane.b32.xlu0 %v2251, 3
        %v2275 = vpop.permute.xlu0 %2274
        %2285 = vset.pattern.permute.xlu0 0
        %2286 = vperm.xlu0 %2285, %v1728
        %v2287 = vpop.permute.xlu0 %2286
        %2290 = vset.pattern.permute.xlu0 0
        %2291 = vperm.xlu0 %2290, %v1729
        %v2292 = vpop.permute.xlu0 %2291
        %2295 = vset.pattern.permute.xlu0 0
        %2296 = vperm.xlu0 %2295, %v1730
        %v2297 = vpop.permute.xlu0 %2296
        %2300 = vset.pattern.permute.xlu0 0
        %2301 = vperm.xlu0 %2300, %v1731
        %v2302 = vpop.permute.xlu0 %2301
        %2305 = vset.pattern.permute.xlu0 0
        %2306 = vperm.xlu0 %2305, %v1732
        %v2307 = vpop.permute.xlu0 %2306
        %2310 = vset.pattern.permute.xlu0 0
        %2311 = vperm.xlu0 %2310, %v1733
        %v2312 = vpop.permute.xlu0 %2311
        %2315 = vset.pattern.permute.xlu0 0
        %2316 = vperm.xlu0 %2315, %v1734
        %v2317 = vpop.permute.xlu0 %2316
        %2320 = vset.pattern.permute.xlu0 0
        %2321 = vperm.xlu0 %2320, %v1735
        %v2322 = vpop.permute.xlu0 %2321
        %v2324 = vmul.f32 %v2287, %v2261
        %v2325 = vmul.f32 %v2292, %v2263
        %v2326 = vmul.f32 %v2297, %v2265
        %v2327 = vmul.f32 %v2302, %v2267
        %v2328 = vmul.f32 %v2307, %v2269
        %v2329 = vmul.f32 %v2312, %v2271
        %v2330 = vmul.f32 %v2317, %v2273
        %v2331 = vmul.f32 %v2322, %v2275
        %2333 = vset.pattern.permute.xlu0 0
        %2334 = vperm.xlu0 %2333, %v1756
        %v2335 = vpop.permute.xlu0 %2334
        %2338 = vset.pattern.permute.xlu0 0
        %2339 = vperm.xlu0 %2338, %v1757
        %v2340 = vpop.permute.xlu0 %2339
        %2343 = vset.pattern.permute.xlu0 0
        %2344 = vperm.xlu0 %2343, %v1758
        %v2345 = vpop.permute.xlu0 %2344
        %2348 = vset.pattern.permute.xlu0 0
        %2349 = vperm.xlu0 %2348, %v1759
        %v2350 = vpop.permute.xlu0 %2349
        %2353 = vset.pattern.permute.xlu0 0
        %2354 = vperm.xlu0 %2353, %v1760
        %v2355 = vpop.permute.xlu0 %2354
        %2358 = vset.pattern.permute.xlu0 0
        %2359 = vperm.xlu0 %2358, %v1761
        %v2360 = vpop.permute.xlu0 %2359
        %2363 = vset.pattern.permute.xlu0 0
        %2364 = vperm.xlu0 %2363, %v1762
        %v2365 = vpop.permute.xlu0 %2364
        %2368 = vset.pattern.permute.xlu0 0
        %2369 = vperm.xlu0 %2368, %v1763
        %v2370 = vpop.permute.xlu0 %2369
        %v2372 = vadd.f32 %v2324, %v2335
        %v2373 = vadd.f32 %v2325, %v2340
        %v2374 = vadd.f32 %v2326, %v2345
        %v2375 = vadd.f32 %v2327, %v2350
        %v2376 = vadd.f32 %v2328, %v2355
        %v2377 = vadd.f32 %v2329, %v2360
        %v2378 = vadd.f32 %v2330, %v2365
        %v2379 = vadd.f32 %v2331, %v2370
        %2380 = vrot.lane.b32.xlu0 %v2244, 2
        %v2381 = vpop.permute.xlu0 %2380
        %2382 = vrot.lane.b32.xlu0 %v2245, 2
        %v2383 = vpop.permute.xlu0 %2382
        %2384 = vrot.lane.b32.xlu0 %v2246, 2
        %v2385 = vpop.permute.xlu0 %2384
        %2386 = vrot.lane.b32.xlu0 %v2247, 2
        %v2387 = vpop.permute.xlu0 %2386
        %2388 = vrot.lane.b32.xlu0 %v2248, 2
        %v2389 = vpop.permute.xlu0 %2388
        %2390 = vrot.lane.b32.xlu0 %v2249, 2
        %v2391 = vpop.permute.xlu0 %2390
        %2392 = vrot.lane.b32.xlu0 %v2250, 2
        %v2393 = vpop.permute.xlu0 %2392
        %2394 = vrot.lane.b32.xlu0 %v2251, 2
        %v2395 = vpop.permute.xlu0 %2394
        %2404 = vset.pattern.permute.xlu0 1
        %2405 = vperm.xlu0 %2404, %v1728
        %v2406 = vpop.permute.xlu0 %2405
        %2408 = vset.pattern.permute.xlu0 1
        %2409 = vperm.xlu0 %2408, %v1729
        %v2410 = vpop.permute.xlu0 %2409
        %2412 = vset.pattern.permute.xlu0 1
        %2413 = vperm.xlu0 %2412, %v1730
        %v2414 = vpop.permute.xlu0 %2413
        %2416 = vset.pattern.permute.xlu0 1
        %2417 = vperm.xlu0 %2416, %v1731
        %v2418 = vpop.permute.xlu0 %2417
        %2420 = vset.pattern.permute.xlu0 1
        %2421 = vperm.xlu0 %2420, %v1732
        %v2422 = vpop.permute.xlu0 %2421
        %2424 = vset.pattern.permute.xlu0 1
        %2425 = vperm.xlu0 %2424, %v1733
        %v2426 = vpop.permute.xlu0 %2425
        %2428 = vset.pattern.permute.xlu0 1
        %2429 = vperm.xlu0 %2428, %v1734
        %v2430 = vpop.permute.xlu0 %2429
        %2432 = vset.pattern.permute.xlu0 1
        %2433 = vperm.xlu0 %2432, %v1735
        %v2434 = vpop.permute.xlu0 %2433
        %v2436 = vmul.f32 %v2406, %v2381
        %v2437 = vmul.f32 %v2410, %v2383
        %v2438 = vmul.f32 %v2414, %v2385
        %v2439 = vmul.f32 %v2418, %v2387
        %v2440 = vmul.f32 %v2422, %v2389
        %v2441 = vmul.f32 %v2426, %v2391
        %v2442 = vmul.f32 %v2430, %v2393
        %v2443 = vmul.f32 %v2434, %v2395
        %v2444 = vadd.f32 %v2372, %v2436
        %v2445 = vadd.f32 %v2373, %v2437
        %v2446 = vadd.f32 %v2374, %v2438
        %v2447 = vadd.f32 %v2375, %v2439
        %v2448 = vadd.f32 %v2376, %v2440
        %v2449 = vadd.f32 %v2377, %v2441
        %v2450 = vadd.f32 %v2378, %v2442
        %v2451 = vadd.f32 %v2379, %v2443
        %2452 = vrot.lane.b32.xlu0 %v2244, 1
        %v2453 = vpop.permute.xlu0 %2452
        %2454 = vrot.lane.b32.xlu0 %v2245, 1
        %v2455 = vpop.permute.xlu0 %2454
        %2456 = vrot.lane.b32.xlu0 %v2246, 1
        %v2457 = vpop.permute.xlu0 %2456
        %2458 = vrot.lane.b32.xlu0 %v2247, 1
        %v2459 = vpop.permute.xlu0 %2458
        %2460 = vrot.lane.b32.xlu0 %v2248, 1
        %v2461 = vpop.permute.xlu0 %2460
        %2462 = vrot.lane.b32.xlu0 %v2249, 1
        %v2463 = vpop.permute.xlu0 %2462
        %2464 = vrot.lane.b32.xlu0 %v2250, 1
        %v2465 = vpop.permute.xlu0 %2464
        %2466 = vrot.lane.b32.xlu0 %v2251, 1
        %v2467 = vpop.permute.xlu0 %2466
        %2476 = vset.pattern.permute.xlu0 2
        %2477 = vperm.xlu0 %2476, %v1728
        %v2478 = vpop.permute.xlu0 %2477
        %2480 = vset.pattern.permute.xlu0 2
        %2481 = vperm.xlu0 %2480, %v1729
        %v2482 = vpop.permute.xlu0 %2481
        %2484 = vset.pattern.permute.xlu0 2
        %2485 = vperm.xlu0 %2484, %v1730
        %v2486 = vpop.permute.xlu0 %2485
        %2488 = vset.pattern.permute.xlu0 2
        %2489 = vperm.xlu0 %2488, %v1731
        %v2490 = vpop.permute.xlu0 %2489
        %2492 = vset.pattern.permute.xlu0 2
        %2493 = vperm.xlu0 %2492, %v1732
        %v2494 = vpop.permute.xlu0 %2493
        %2496 = vset.pattern.permute.xlu0 2
        %2497 = vperm.xlu0 %2496, %v1733
        %v2498 = vpop.permute.xlu0 %2497
        %2500 = vset.pattern.permute.xlu0 2
        %2501 = vperm.xlu0 %2500, %v1734
        %v2502 = vpop.permute.xlu0 %2501
        %2504 = vset.pattern.permute.xlu0 2
        %2505 = vperm.xlu0 %2504, %v1735
        %v2506 = vpop.permute.xlu0 %2505
        %v2508 = vmul.f32 %v2478, %v2453
        %v2509 = vmul.f32 %v2482, %v2455
        %v2510 = vmul.f32 %v2486, %v2457
        %v2511 = vmul.f32 %v2490, %v2459
        %v2512 = vmul.f32 %v2494, %v2461
        %v2513 = vmul.f32 %v2498, %v2463
        %v2514 = vmul.f32 %v2502, %v2465
        %v2515 = vmul.f32 %v2506, %v2467
        %v2516 = vadd.f32 %v2444, %v2508
        %v2517 = vadd.f32 %v2445, %v2509
        %v2518 = vadd.f32 %v2446, %v2510
        %v2519 = vadd.f32 %v2447, %v2511
        %v2520 = vadd.f32 %v2448, %v2512
        %v2521 = vadd.f32 %v2449, %v2513
        %v2522 = vadd.f32 %v2450, %v2514
        %v2523 = vadd.f32 %v2451, %v2515
        %2524 = vset.pattern.permute.xlu0 3
        %2525 = vperm.xlu0 %2524, %v1728
        %v2526 = vpop.permute.xlu0 %2525
        %2528 = vset.pattern.permute.xlu0 3
        %2529 = vperm.xlu0 %2528, %v1729
        %v2530 = vpop.permute.xlu0 %2529
        %2532 = vset.pattern.permute.xlu0 3
        %2533 = vperm.xlu0 %2532, %v1730
        %v2534 = vpop.permute.xlu0 %2533
        %2536 = vset.pattern.permute.xlu0 3
        %2537 = vperm.xlu0 %2536, %v1731
        %v2538 = vpop.permute.xlu0 %2537
        %2540 = vset.pattern.permute.xlu0 3
        %2541 = vperm.xlu0 %2540, %v1732
        %v2542 = vpop.permute.xlu0 %2541
        %2544 = vset.pattern.permute.xlu0 3
        %2545 = vperm.xlu0 %2544, %v1733
        %v2546 = vpop.permute.xlu0 %2545
        %2548 = vset.pattern.permute.xlu0 3
        %2549 = vperm.xlu0 %2548, %v1734
        %v2550 = vpop.permute.xlu0 %2549
        %2552 = vset.pattern.permute.xlu0 3
        %2553 = vperm.xlu0 %2552, %v1735
        %v2554 = vpop.permute.xlu0 %2553
        %v2556 = vmul.f32 %v2526, %v2244
        %v2557 = vmul.f32 %v2530, %v2245
        %v2558 = vmul.f32 %v2534, %v2246
        %v2559 = vmul.f32 %v2538, %v2247
        %v2560 = vmul.f32 %v2542, %v2248
        %v2561 = vmul.f32 %v2546, %v2249
        %v2562 = vmul.f32 %v2550, %v2250
        %v2563 = vmul.f32 %v2554, %v2251
        %v2564 = vadd.f32 %v2516, %v2556
        %v2565 = vadd.f32 %v2517, %v2557
        %v2566 = vadd.f32 %v2518, %v2558
        %v2567 = vadd.f32 %v2519, %v2559
        %v2568 = vadd.f32 %v2520, %v2560
        %v2569 = vadd.f32 %v2521, %v2561
        %v2570 = vadd.f32 %v2522, %v2562
        %v2571 = vadd.f32 %v2523, %v2563
        %2572 = vrot.lane.b32.xlu0 %v2244, 127
        %v2573 = vpop.permute.xlu0 %2572
        %2574 = vrot.lane.b32.xlu0 %v2245, 127
        %v2575 = vpop.permute.xlu0 %2574
        %2576 = vrot.lane.b32.xlu0 %v2246, 127
        %v2577 = vpop.permute.xlu0 %2576
        %2578 = vrot.lane.b32.xlu0 %v2247, 127
        %v2579 = vpop.permute.xlu0 %2578
        %2580 = vrot.lane.b32.xlu0 %v2248, 127
        %v2581 = vpop.permute.xlu0 %2580
        %2582 = vrot.lane.b32.xlu0 %v2249, 127
        %v2583 = vpop.permute.xlu0 %2582
        %2584 = vrot.lane.b32.xlu0 %v2250, 127
        %v2585 = vpop.permute.xlu0 %2584
        %2586 = vrot.lane.b32.xlu0 %v2251, 127
        %v2587 = vpop.permute.xlu0 %2586
        %2596 = vset.pattern.permute.xlu0 4
        %2597 = vperm.xlu0 %2596, %v1728
        %v2598 = vpop.permute.xlu0 %2597
        %2600 = vset.pattern.permute.xlu0 4
        %2601 = vperm.xlu0 %2600, %v1729
        %v2602 = vpop.permute.xlu0 %2601
        %2604 = vset.pattern.permute.xlu0 4
        %2605 = vperm.xlu0 %2604, %v1730
        %v2606 = vpop.permute.xlu0 %2605
        %2608 = vset.pattern.permute.xlu0 4
        %2609 = vperm.xlu0 %2608, %v1731
        %v2610 = vpop.permute.xlu0 %2609
        %2612 = vset.pattern.permute.xlu0 4
        %2613 = vperm.xlu0 %2612, %v1732
        %v2614 = vpop.permute.xlu0 %2613
        %2616 = vset.pattern.permute.xlu0 4
        %2617 = vperm.xlu0 %2616, %v1733
        %v2618 = vpop.permute.xlu0 %2617
        %2620 = vset.pattern.permute.xlu0 4
        %2621 = vperm.xlu0 %2620, %v1734
        %v2622 = vpop.permute.xlu0 %2621
        %2624 = vset.pattern.permute.xlu0 4
        %2625 = vperm.xlu0 %2624, %v1735
        %v2626 = vpop.permute.xlu0 %2625
        %v2628 = vmul.f32 %v2598, %v2573
        %v2629 = vmul.f32 %v2602, %v2575
        %v2630 = vmul.f32 %v2606, %v2577
        %v2631 = vmul.f32 %v2610, %v2579
        %v2632 = vmul.f32 %v2614, %v2581
        %v2633 = vmul.f32 %v2618, %v2583
        %v2634 = vmul.f32 %v2622, %v2585
        %v2635 = vmul.f32 %v2626, %v2587
        %v2636 = vadd.f32 %v2564, %v2628
        %v2637 = vadd.f32 %v2565, %v2629
        %v2638 = vadd.f32 %v2566, %v2630
        %v2639 = vadd.f32 %v2567, %v2631
        %v2640 = vadd.f32 %v2568, %v2632
        %v2641 = vadd.f32 %v2569, %v2633
        %v2642 = vadd.f32 %v2570, %v2634
        %v2643 = vadd.f32 %v2571, %v2635
        %2644 = vrot.lane.b32.xlu0 %v2244, 126
        %v2645 = vpop.permute.xlu0 %2644
        %2646 = vrot.lane.b32.xlu0 %v2245, 126
        %v2647 = vpop.permute.xlu0 %2646
        %2648 = vrot.lane.b32.xlu0 %v2246, 126
        %v2649 = vpop.permute.xlu0 %2648
        %2650 = vrot.lane.b32.xlu0 %v2247, 126
        %v2651 = vpop.permute.xlu0 %2650
        %2652 = vrot.lane.b32.xlu0 %v2248, 126
        %v2653 = vpop.permute.xlu0 %2652
        %2654 = vrot.lane.b32.xlu0 %v2249, 126
        %v2655 = vpop.permute.xlu0 %2654
        %2656 = vrot.lane.b32.xlu0 %v2250, 126
        %v2657 = vpop.permute.xlu0 %2656
        %2658 = vrot.lane.b32.xlu0 %v2251, 126
        %v2659 = vpop.permute.xlu0 %2658
        %2668 = vset.pattern.permute.xlu0 5
        %2669 = vperm.xlu0 %2668, %v1728
        %v2670 = vpop.permute.xlu0 %2669
        %2672 = vset.pattern.permute.xlu0 5
        %2673 = vperm.xlu0 %2672, %v1729
        %v2674 = vpop.permute.xlu0 %2673
        %2676 = vset.pattern.permute.xlu0 5
        %2677 = vperm.xlu0 %2676, %v1730
        %v2678 = vpop.permute.xlu0 %2677
        %2680 = vset.pattern.permute.xlu0 5
        %2681 = vperm.xlu0 %2680, %v1731
        %v2682 = vpop.permute.xlu0 %2681
        %2684 = vset.pattern.permute.xlu0 5
        %2685 = vperm.xlu0 %2684, %v1732
        %v2686 = vpop.permute.xlu0 %2685
        %2688 = vset.pattern.permute.xlu0 5
        %2689 = vperm.xlu0 %2688, %v1733
        %v2690 = vpop.permute.xlu0 %2689
        %2692 = vset.pattern.permute.xlu0 5
        %2693 = vperm.xlu0 %2692, %v1734
        %v2694 = vpop.permute.xlu0 %2693
        %2696 = vset.pattern.permute.xlu0 5
        %2697 = vperm.xlu0 %2696, %v1735
        %v2698 = vpop.permute.xlu0 %2697
        %v2700 = vmul.f32 %v2670, %v2645
        %v2701 = vmul.f32 %v2674, %v2647
        %v2702 = vmul.f32 %v2678, %v2649
        %v2703 = vmul.f32 %v2682, %v2651
        %v2704 = vmul.f32 %v2686, %v2653
        %v2705 = vmul.f32 %v2690, %v2655
        %v2706 = vmul.f32 %v2694, %v2657
        %v2707 = vmul.f32 %v2698, %v2659
        %v2708 = vadd.f32 %v2636, %v2700
        %v2709 = vadd.f32 %v2637, %v2701
        %v2710 = vadd.f32 %v2638, %v2702
        %v2711 = vadd.f32 %v2639, %v2703
        %v2712 = vadd.f32 %v2640, %v2704
        %v2713 = vadd.f32 %v2641, %v2705
        %v2714 = vadd.f32 %v2642, %v2706
        %v2715 = vadd.f32 %v2643, %v2707
        %2716 = vrot.lane.b32.xlu0 %v2244, 125
        %v2717 = vpop.permute.xlu0 %2716
        %2718 = vrot.lane.b32.xlu0 %v2245, 125
        %v2719 = vpop.permute.xlu0 %2718
        %2720 = vrot.lane.b32.xlu0 %v2246, 125
        %v2721 = vpop.permute.xlu0 %2720
        %2722 = vrot.lane.b32.xlu0 %v2247, 125
        %v2723 = vpop.permute.xlu0 %2722
        %2724 = vrot.lane.b32.xlu0 %v2248, 125
        %v2725 = vpop.permute.xlu0 %2724
        %2726 = vrot.lane.b32.xlu0 %v2249, 125
        %v2727 = vpop.permute.xlu0 %2726
        %2728 = vrot.lane.b32.xlu0 %v2250, 125
        %v2729 = vpop.permute.xlu0 %2728
        %2730 = vrot.lane.b32.xlu0 %v2251, 125
        %v2731 = vpop.permute.xlu0 %2730
        %2740 = vset.pattern.permute.xlu0 6
        %2741 = vperm.xlu0 %2740, %v1728
        %v2742 = vpop.permute.xlu0 %2741
        %2744 = vset.pattern.permute.xlu0 6
        %2745 = vperm.xlu0 %2744, %v1729
        %v2746 = vpop.permute.xlu0 %2745
        %2748 = vset.pattern.permute.xlu0 6
        %2749 = vperm.xlu0 %2748, %v1730
        %v2750 = vpop.permute.xlu0 %2749
        %2752 = vset.pattern.permute.xlu0 6
        %2753 = vperm.xlu0 %2752, %v1731
        %v2754 = vpop.permute.xlu0 %2753
        %2756 = vset.pattern.permute.xlu0 6
        %2757 = vperm.xlu0 %2756, %v1732
        %v2758 = vpop.permute.xlu0 %2757
        %2760 = vset.pattern.permute.xlu0 6
        %2761 = vperm.xlu0 %2760, %v1733
        %v2762 = vpop.permute.xlu0 %2761
        %2764 = vset.pattern.permute.xlu0 6
        %2765 = vperm.xlu0 %2764, %v1734
        %v2766 = vpop.permute.xlu0 %2765
        %2768 = vset.pattern.permute.xlu0 6
        %2769 = vperm.xlu0 %2768, %v1735
        %v2770 = vpop.permute.xlu0 %2769
        %v2772 = vmul.f32 %v2742, %v2717
        %v2773 = vmul.f32 %v2746, %v2719
        %v2774 = vmul.f32 %v2750, %v2721
        %v2775 = vmul.f32 %v2754, %v2723
        %v2776 = vmul.f32 %v2758, %v2725
        %v2777 = vmul.f32 %v2762, %v2727
        %v2778 = vmul.f32 %v2766, %v2729
        %v2779 = vmul.f32 %v2770, %v2731
        %v2780 = vadd.f32 %v2708, %v2772
        %v2781 = vadd.f32 %v2709, %v2773
        %v2782 = vadd.f32 %v2710, %v2774
        %v2783 = vadd.f32 %v2711, %v2775
        %v2784 = vadd.f32 %v2712, %v2776
        %v2785 = vadd.f32 %v2713, %v2777
        %v2786 = vadd.f32 %v2714, %v2778
        %v2787 = vadd.f32 %v2715, %v2779
        %v2788 = vsub.f32 0.0, %v2784
        %v2789 = vsub.f32 0.0, %v2785
        %v2790 = vsub.f32 0.0, %v2786
        %v2791 = vsub.f32 0.0, %v2787
        %v2792 = vmul.f32 %v2788, 1.442695
        %v2793 = vpow.pop %v2792
        %v2794 = vmul.f32 %v2789, 1.442695
        %v2795 = vpow.pop %v2794
        %v2796 = vmul.f32 %v2790, 1.442695
        %v2797 = vpow.pop %v2796
        %v2798 = vmul.f32 %v2791, 1.442695
        %v2799 = vpow.pop %v2798
        %v2800 = vadd.f32 %v2793, 1.0
        %v2801 = vadd.f32 %v2795, 1.0
        %v2802 = vadd.f32 %v2797, 1.0
        %v2803 = vadd.f32 %v2799, 1.0
        %v2804 = vrcp.pop %v2800
        %v2805 = vmul.f32 1.0, %v2804
        %v2806 = vrcp.pop %v2801
        %v2807 = vmul.f32 1.0, %v2806
        %v2808 = vrcp.pop %v2802
        %v2809 = vmul.f32 1.0, %v2808
        %v2810 = vrcp.pop %v2803
        %v2811 = vmul.f32 1.0, %v2810
        %v2812 = vmul.f32 %v2780, %v2805
        %v2813 = vmul.f32 %v2781, %v2807
        %v2814 = vmul.f32 %v2782, %v2809
        %v2815 = vmul.f32 %v2783, %v2811
        %v2816 = vpack.c.bf16 %v2813, %v2812
        %v2817 = vpack.c.bf16 %v2815, %v2814
        %2819 = vset.pattern.permute.xlu0 0
        %2820 = vperm.xlu0 %2819, %v1764
        %v2821 = vpop.permute.xlu0 %2820
        %2824 = vset.pattern.permute.xlu0 0
        %2825 = vperm.xlu0 %2824, %v1765
        %v2826 = vpop.permute.xlu0 %2825
        %2829 = vset.pattern.permute.xlu0 0
        %2830 = vperm.xlu0 %2829, %v1766
        %v2831 = vpop.permute.xlu0 %2830
        %2834 = vset.pattern.permute.xlu0 0
        %2835 = vperm.xlu0 %2834, %v1767
        %v2836 = vpop.permute.xlu0 %2835
        %v2842 = vunpack.c.l.b16 %v1736
        %v2843 = vunpack.c.l.b16 %v1737
        %v2844 = vunpack.c.l.b16 %v1738
        %v2845 = vunpack.c.l.b16 %v1739
        %v2846 = vpack.c.b16 %v2843, %v2842
        %v2847 = vpack.c.b16 %v2845, %v2844
        %v2849 = vsel %vm753, %v2846, 0
        %v2852 = vsel %vm753, %v2847, 0
        %2854 = vmatprep.subr.bf16.mxu0 0
        %2855 = vmatpush1.bf16.msra.mxu0 %v2816
        %2856 = vmatprep.subr.bf16.mxu0 0
        %2857 = vmatpush1.bf16.msra.mxu0 %v2817
        %2858 = vmatprep.subr.bf16.mxu0 0
        %2859 = vmatpush1.bf16.msra.mxu0 0
        %2860 = vmatprep.subr.bf16.mxu0 0
        %2861 = vmatpush1.bf16.msra.mxu0 0
        %2862 = vmatprep.subr.bf16.mxu0 0
        %2863 = vmatpush1.bf16.msra.mxu0 0
        %2864 = vmatprep.subr.bf16.mxu0 0
        %2865 = vmatpush1.bf16.msra.mxu0 0
        %2866 = vmatprep.subr.bf16.mxu0 0
        %2867 = vmatpush1.bf16.msra.mxu0 0
        %2868 = vmatprep.subr.bf16.mxu0 0
        %2869 = vmatpush1.bf16.msra.mxu0 0
        %2870 = vmatprep.subr.bf16.mxu0 0
        %2871 = vmatpush1.bf16.msra.mxu0 0
        %2872 = vmatprep.subr.bf16.mxu0 0
        %2873 = vmatpush1.bf16.msra.mxu0 0
        %2874 = vmatprep.subr.bf16.mxu0 0
        %2875 = vmatpush1.bf16.msra.mxu0 0
        %2876 = vmatprep.subr.bf16.mxu0 0
        %2877 = vmatpush1.bf16.msra.mxu0 0
        %2878 = vmatprep.subr.bf16.mxu0 0
        %2879 = vmatpush1.bf16.msra.mxu0 0
        %2880 = vmatprep.subr.bf16.mxu0 0
        %2881 = vmatpush1.bf16.msra.mxu0 0
        %2882 = vmatprep.subr.bf16.mxu0 0
        %2883 = vmatpush1.bf16.msra.mxu0 0
        %2884 = vmatprep.subr.bf16.mxu0 0
        %2885 = vmatpush1.bf16.msra.mxu0 0
        %2886 = vmatprep.mubr.bf16.mxu0 0
        %2887 = vmatmul.mubr.bf16.gmra.mrb[0].mxu0 %v2849
        %v2888 = vpop.f32.mrb[0].mxu0
        %v2889 = vadd.f32 %v2821, %v2888
        %v2890 = vpop.f32.mrb[0].mxu0
        %v2891 = vpop.f32.mrb[0].mxu0
        %v2892 = vadd.f32 %v2826, %v2891
        %v2893 = vpop.f32.mrb[0].mxu0
        %2894 = vmatprep.mubr.bf16.mxu0 0
        %2895 = vmatmul.mubr.bf16.gmra.mrb[0].mxu0 %v2852
        %v2896 = vpop.f32.mrb[0].mxu0
        %v2897 = vadd.f32 %v2831, %v2896
        %v2898 = vpop.f32.mrb[0].mxu0
        %v2899 = vpop.f32.mrb[0].mxu0
        %v2900 = vadd.f32 %v2836, %v2899
        %v2901 = vpop.f32.mrb[0].mxu0
        %2902 = vdwg.mxu0
        %v2903 = vadd.f32 %v460, %v2889
        %v2904 = vadd.f32 %v461, %v2892
        %v2905 = vadd.f32 %v462, %v2897
        %v2906 = vadd.f32 %v463, %v2900
        %2907 = vst [vmem:[%s448] sm:$0xff] %v2903
        %2908 = vst [vmem:[%s448 + $0x8] sm:$0xff] %v2904
        %2909 = vst [vmem:[%s448 + $0x10] sm:$0xff] %v2905
        %2910 = vst [vmem:[%s448 + $0x18] sm:$0xff] %v2906
        %2911 = vst [vmem:[%s448 + $0x20] sm:$0xff] %v1692
        %2912 = vst [vmem:[%s448 + $0x28] sm:$0xff] %v1693
        %2913 = vst [vmem:[%s448 + $0x30] sm:$0xff] %v1694
        %2914 = vst [vmem:[%s448 + $0x38] sm:$0xff] %v1695
        %s2915 = sand.u32 %s318, 1
        %s2916 = scalar_lea.sflag [#allocation3], %s2915
        %s2917 = sand.u32 %s318, 1
        %s2918 = smul.addr %s2917, 64
        %s2919 = scalar_lea.vmem [#allocation2], %s2918
        // Predicated region
        $region73: #{tpu_custom_call.1} parent=71 // pred_check
          %p2920 = pneg %p328
        $region74: #{tpu_custom_call.1} parent=71 // pred_check_branch
          %2922 = sbr.rel (%p2920) target = $region76
        $region75: #{tpu_custom_call.1} parent=71 // pred_region
          %s2924 = ssub.s32 1024, 1024
          %2925 = vsyncadd %s2916, %s2924
          %s2926 = smul.addr %s27, 8
          %s2927 = smul.addr %s2926, 128
          %s2928 = scalar_lea.hbm %s13, %s2927
          %s2929 = sshll.u32 %s2919, 4
          %s2930 = int_to_ptr.vmem [resolvable:$true] %s2929
          %2935 = dma.vmem_to_hbm [thread:$0]  %s2930, 1024, %s2928, %s2916, 128, 128, 8
        $region76: #{tpu_custom_call.1} parent=71 // pred_fallthru
          _
      $region72: #{tpu_custom_call.1} parent=5 // pred_fallthru
        _
      %p2936 = scmp.le.s32.totalorder 2, %s22
      // Predicated region
      $region77: #{tpu_custom_call.1} parent=5 // pred_check
        %p2937 = pneg %p2936
      $region78: #{tpu_custom_call.1} parent=5 // pred_check_branch
        %2939 = sbr.rel (%p2937) target = $region80
      $region79: #{tpu_custom_call.1} parent=5 // pred_region
        %s2940 = ssub.s32 %s22, 2
        // Predicated region
        $region81: #{tpu_custom_call.1} parent=79 // pred_check
          %p2941 = pneg %p334
        $region82: #{tpu_custom_call.1} parent=79 // pred_check_branch
          %2943 = sbr.rel (%p2941) target = $region84
        $region83: #{tpu_custom_call.1} parent=79 // pred_region
          %s2944 = sand.u32 %s319, 1
          %s2945 = scalar_lea.sflag [#allocation3], %s2944
          %s2946 = sand.u32 %s319, 1
          %s2947 = smul.addr %s2946, 64
          %s2948 = scalar_lea.vmem [#allocation2], %s2947
          %2949 = dma.done %s2945, 1024
        $region84: #{tpu_custom_call.1} parent=79 // pred_fallthru
          _
      $region80: #{tpu_custom_call.1} parent=5 // pred_fallthru
        _
    $region6: #{tpu_custom_call.1} parent=1 // loop_footer
      %s26 = sadd.s32 1, %s22
    $region7: #{tpu_custom_call.1} parent=1 // loop_footer_branch
      %21 = sbr.rel target = $region3
    $region8: #{tpu_custom_call.1} parent=1 // loop_exit
      _
    %2950 = vsyncpa [#allocation3], 1
    %s2951 = scalar_lea.sflag [#allocation3], 1
    %2952 = vsyncpa %s2951, 1

</llo_original>
